<compile_context>
chip_gen: v7x
topology: tpu7x:2x2x1
jax: 0.10.0
libtpu: 0.0.40
codegen_flags: <defaults>
</compile_context>

<pallas_src>
import jax
import jax.numpy as jnp
from jax import lax
from jax.experimental import pallas as pl
from jax.experimental.pallas import tpu as pltpu


def _lstm2_wave_kernel(x_ref, lens_ref, hcat0_ref, ccat0_ref,
                       w_in_ref, b_in_ref, w_rec_ref,
                       out_ref, gin_scr):
    T, Bp, E = x_ref.shape
    H2 = hcat0_ref.shape[1]            # 2*H : packed [layer0 | layer1] state
    H = H2 // 2
    G8 = w_rec_ref.shape[1]            # 8*H : interleaved gates [i0 i1 f0 f1 g0 g1 o0 o1]

    # ---- hoisted loop-invariant loads / constants -------------------------
    w_rec = w_rec_ref[...]                                   # (2H, 8H) block-diag fused weight
    lens = lens_ref[...]                                     # (Bp, 1) int32

    col8 = lax.broadcasted_iota(jnp.int32, (1, G8), 1)
    is_g = (col8 >= 4 * H) & (col8 < 6 * H)                  # g0|g1 lanes -> tanh
    # sigmoid(x) = 0.5*tanh(x/2) + 0.5  => one tanh for all gates
    half8 = jnp.where(is_g, 1.0, 0.5).astype(jnp.float32)
    bias8 = 1.0 - half8

    col2 = lax.broadcasted_iota(jnp.int32, (1, H2), 1)
    lhalf = (col2 >= H).astype(jnp.int32)                    # 0 = layer-0 lanes, 1 = layer-1

    # ---- batched input projection (one MXU pass) ---------------------------
    # Layer-0 gate lanes get x_t @ Wih0 + (bih0+bhh0); layer-1 lanes carry
    # (bih1+bhh1) only (their input term h0 @ Wih1 is folded into w_rec).
    x2d = x_ref[...].reshape(T * Bp, E)
    gin_scr[...] = (jnp.dot(x2d, w_in_ref[...],
                            preferred_element_type=jnp.float32)
                    + b_in_ref[...]).reshape(T, Bp, G8)

    # ---- diagonal-wavefront recurrence -------------------------------------
    # Wave w updates layer-0 at step w and layer-1 at step w-1 with a single
    # (Bp, 2H) @ (2H, 8H) matmul.  Out-of-range steps (w == T for layer 0,
    # w == 0 for layer 1) and padded timesteps are frozen by the keep mask.
    def wave(w, carry):
        hcat, ccat = carry                                   # (Bp, 2H) each
        gin = gin_scr[jnp.minimum(w, T - 1)]                 # (Bp, 8H); layer-0 lanes masked at w==T
        gates = gin + jnp.dot(hcat, w_rec,
                              preferred_element_type=jnp.float32)
        act = jnp.tanh(gates * half8) * half8 + bias8        # single-tanh gate nonlinearity
        i = act[:, 0 * H2:1 * H2]
        f = act[:, 1 * H2:2 * H2]
        g = act[:, 2 * H2:3 * H2]
        o = act[:, 3 * H2:4 * H2]
        c_new = f * ccat + i * g
        h_new = o * jnp.tanh(c_new)
        step = w - lhalf                                     # (1, 2H): step index per lane-half
        keep = (step >= 0) & (step < lens)                   # (Bp, 2H) pack_padded freeze mask
        hcat = jnp.where(keep, h_new, hcat)
        ccat = jnp.where(keep, c_new, ccat)
        return hcat, ccat

    unroll = True if T <= 32 else 8
    hcat, _ = lax.fori_loop(0, T + 1, wave,
                            (hcat0_ref[...], ccat0_ref[...]), unroll=unroll)

    # Dropout(p=0.2) in eval mode is the identity.
    # TODO(synk): training-mode stochastic dropout not reproduced (eval semantics).
    out_ref[...] = hcat


def prepare_lstm_params(params, embedding_dim, hidden_dim):
    """One-time parameter prep: fold biases, transpose, interleave gates and
    build the fused block-diagonal recurrent weight.

    Gate lane layout: [i0 i1 f0 f1 g0 g1 o0 o1] (PyTorch order i,f,g,o)."""
    E, H = embedding_dim, hidden_dim
    (wih0, whh0, bih0, bhh0), (wih1, whh1, bih1, bhh1) = params

    def interleave(a, b):
        # a, b: (rows, 4H) in gate order (i,f,g,o) -> (rows, 8H) interleaved
        parts = []
        for k in range(4):
            parts += [a[:, k * H:(k + 1) * H], b[:, k * H:(k + 1) * H]]
        return jnp.concatenate(parts, axis=1)

    zE = jnp.zeros((E, 4 * H), jnp.float32)
    zH = jnp.zeros((H, 4 * H), jnp.float32)
    w_in = interleave(wih0.T, zE)                                 # (E, 8H)
    b_in = interleave((bih0 + bhh0).reshape(1, -1),
                      (bih1 + bhh1).reshape(1, -1))               # (1, 8H)
    w_rec = jnp.concatenate([interleave(whh0.T, wih1.T),          # rows 0:H   <- h0
                             interleave(zH, whh1.T)], axis=0)     # rows H:2H  <- h1
    return w_in, b_in, w_rec                                      # w_rec: (2H, 8H)


def lstm_classifier_forward(x, lengths, h0, c0, prepared):
    """x: (T, B, E) f32; lengths: (B,) int; h0/c0: (2, B, H) f32.
    prepared = prepare_lstm_params(params, E, H) (computed once)."""
    T, B, E = x.shape
    L, _, H = h0.shape
    assert L == 2
    w_in, b_in, w_rec = prepared

    # Pad batch to a sublane multiple (8). Padded rows get length 0 so their
    # state stays frozen at the (zero) initial value and is sliced off below.
    Bp = ((B + 7) // 8) * 8
    pad = Bp - B
    lengths = lengths.astype(jnp.int32)
    if pad:
        x = jnp.pad(x, ((0, 0), (0, pad), (0, 0)))
        h0 = jnp.pad(h0, ((0, 0), (0, pad), (0, 0)))
        c0 = jnp.pad(c0, ((0, 0), (0, pad), (0, 0)))
        lengths = jnp.pad(lengths, (0, pad))

    hcat0 = jnp.concatenate([h0[0], h0[1]], axis=1)   # (Bp, 2H) packed state
    ccat0 = jnp.concatenate([c0[0], c0[1]], axis=1)
    lens2d = lengths.reshape(Bp, 1)

    BT = 8                           # batch tile (one sublane group)
    G8 = 8 * H
    out = pl.pallas_call(
        _lstm2_wave_kernel,
        out_shape=jax.ShapeDtypeStruct((Bp, 2 * H), jnp.float32),
        grid=(Bp // BT,),
        in_specs=[
            pl.BlockSpec((T, BT, E), lambda b: (0, b, 0)),        # x
            pl.BlockSpec((BT, 1), lambda b: (b, 0)),              # lengths
            pl.BlockSpec((BT, 2 * H), lambda b: (b, 0)),          # h0 packed
            pl.BlockSpec((BT, 2 * H), lambda b: (b, 0)),          # c0 packed
            pl.BlockSpec((E, G8), lambda b: (0, 0)),              # fused input weight
            pl.BlockSpec((1, G8), lambda b: (0, 0)),              # fused bias
            pl.BlockSpec((2 * H, G8), lambda b: (0, 0)),          # fused recurrent weight
        ],
        out_specs=pl.BlockSpec((BT, 2 * H), lambda b: (b, 0)),
        scratch_shapes=[pltpu.VMEM((T, BT, G8), jnp.float32)],    # per-tile gate projections
        compiler_params=pltpu.CompilerParams(
            dimension_semantics=("parallel",)),                    # batch-parallel (v7x 2 TCs)
    )(x, lens2d, hcat0, ccat0, w_in, b_in, w_rec)

    # final hidden of the last (2nd) layer = layer-1 lanes of the packed state
    return out[:B, H:]


def lstm_ref(x, lengths, h0, c0, params):
    """Pure-JAX reference of the same semantics (for verification)."""
    T, B, E = x.shape
    H = h0.shape[2]
    h = [h0[0], h0[1]]
    c = [c0[0], c0[1]]

    def cell(x_t, h_, c_, wih, whh, bih, bhh):
        gates = x_t @ wih.T + bih + h_ @ whh.T + bhh
        i = jax.nn.sigmoid(gates[:, :H])
        f = jax.nn.sigmoid(gates[:, H:2 * H])
        g = jnp.tanh(gates[:, 2 * H:3 * H])
        o = jax.nn.sigmoid(gates[:, 3 * H:])
        cn = f * c_ + i * g
        hn = o * jnp.tanh(cn)
        return hn, cn

    for t in range(T):
        mask = (t < lengths).astype(jnp.float32)[:, None]
        hn0, cn0 = cell(x[t], h[0], c[0], *params[0])
        h[0] = mask * hn0 + (1 - mask) * h[0]
        c[0] = mask * cn0 + (1 - mask) * c[0]
        hn1, cn1 = cell(h[0], h[1], c[1], *params[1])
        h[1] = mask * hn1 + (1 - mask) * h[1]
        c[1] = mask * cn1 + (1 - mask) * c[1]
    return h[1]


if __name__ == "__main__":
    T, B, E, H = 8, 4, 16, 32          # seq=8, batch=4, embedding_dim=16, hidden_dim=32
    NUM_LAYERS = 2                      # output_size is unused by forward()

    key = jax.random.PRNGKey(0)
    keys = jax.random.split(key, 12)

    x = jax.random.normal(keys[0], (T, B, E), dtype=jnp.float32)
    lengths = jnp.array([8, 6, 5, 3], dtype=jnp.int32)   # sorted desc, as pack_padded_sequence expects

    # init_hidden uses randn — make it deterministic with fixed keys
    h0 = jax.random.normal(keys[1], (NUM_LAYERS, B, H), dtype=jnp.float32)
    c0 = jax.random.normal(keys[2], (NUM_LAYERS, B, H), dtype=jnp.float32)

    # deterministic LSTM parameters (PyTorch shapes: W_ih (4H, in), W_hh (4H, H), biases (4H,))
    s = 0.1
    params = (
        (s * jax.random.normal(keys[3], (4 * H, E), jnp.float32),
         s * jax.random.normal(keys[4], (4 * H, H), jnp.float32),
         s * jax.random.normal(keys[5], (4 * H,), jnp.float32),
         s * jax.random.normal(keys[6], (4 * H,), jnp.float32)),
        (s * jax.random.normal(keys[7], (4 * H, H), jnp.float32),
         s * jax.random.normal(keys[8], (4 * H, H), jnp.float32),
         s * jax.random.normal(keys[9], (4 * H,), jnp.float32),
         s * jax.random.normal(keys[10], (4 * H,), jnp.float32)),
    )

    prepared = prepare_lstm_params(params, E, H)   # one-time weight prep (not per call)
    out = lstm_classifier_forward(x, lengths, h0, c0, prepared)
    out = jax.block_until_ready(out)

    ref = lstm_ref(x, lengths, h0, c0, params)
    assert out.shape == (B, H)
    assert jnp.allclose(out, ref, atol=1e-4, rtol=1e-4), "mismatch vs reference"

    print("KERNEL_OK")
</pallas_src>

<mosaic_0001>
module attributes {stable_mosaic.version = 11 : i64} {
  func.func @_lstm2_wave_kernel(%arg0: i32, %arg1: memref<8x8x16xf32, #tpu.memory_space<vmem>>, %arg2: memref<8x1xi32, #tpu.memory_space<vmem>>, %arg3: memref<8x64xf32, #tpu.memory_space<vmem>>, %arg4: memref<8x64xf32, #tpu.memory_space<vmem>>, %arg5: memref<16x256xf32, #tpu.memory_space<vmem>>, %arg6: memref<1x256xf32, #tpu.memory_space<vmem>>, %arg7: memref<64x256xf32, #tpu.memory_space<vmem>>, %arg8: memref<8x64xf32, #tpu.memory_space<vmem>>, %arg9: memref<8x8x256xf32, #tpu.memory_space<vmem>>) attributes {dimension_semantics = [#tpu.dimension_semantics<parallel>], iteration_bounds = array<i64: 1>, scalar_prefetch = 0 : i64, scratch_operands = 1 : i64, tpu.core_type = #tpu.core_type<tc>, window_params = [{transform_indices = @transform_0, window_bounds = array<i64: 8, 8, 16>}, {transform_indices = @transform_1, window_bounds = array<i64: 8, 1>}, {transform_indices = @transform_2, window_bounds = array<i64: 8, 64>}, {transform_indices = @transform_3, window_bounds = array<i64: 8, 64>}, {pipeline_mode = #tpu.pipeline_mode<synchronous>, transform_indices = @transform_4, window_bounds = array<i64: 16, 256>}, {pipeline_mode = #tpu.pipeline_mode<synchronous>, transform_indices = @transform_5, window_bounds = array<i64: 1, 256>}, {pipeline_mode = #tpu.pipeline_mode<synchronous>, transform_indices = @transform_6, window_bounds = array<i64: 64, 256>}, {transform_indices = @transform_7, window_bounds = array<i64: 8, 64>}]} {
    %c0 = arith.constant 0 : index
    %c0_0 = arith.constant 0 : index
    %0 = vector.load %arg7[%c0, %c0_0] : memref<64x256xf32, #tpu.memory_space<vmem>>, vector<64x256xf32>
    %c0_1 = arith.constant 0 : index
    %c0_2 = arith.constant 0 : index
    %1 = vector.load %arg2[%c0_1, %c0_2] : memref<8x1xi32, #tpu.memory_space<vmem>>, vector<8x1xi32>
    %2 = tpu.iota {dimensions = array<i32: 1>} : vector<1x256xi32>
    %c128_i32 = arith.constant 128 : i32
    %3 = vector.broadcast %c128_i32 : i32 to vector<1x256xi32>
    %4 = arith.cmpi sge, %2, %3 : vector<1x256xi32>
    %c192_i32 = arith.constant 192 : i32
    %5 = vector.broadcast %c192_i32 : i32 to vector<1x256xi32>
    %6 = arith.cmpi slt, %2, %5 : vector<1x256xi32>
    %7 = arith.andi %4, %6 : vector<1x256xi1>
    %cst = arith.constant 1.000000e+00 : f32
    %cst_3 = arith.constant 5.000000e-01 : f32
    %8 = vector.broadcast %cst : f32 to vector<1x256xf32>
    %9 = vector.broadcast %cst_3 : f32 to vector<1x256xf32>
    %10 = arith.select %7, %8, %9 : vector<1x256xi1>, vector<1x256xf32>
    %cst_4 = arith.constant 1.000000e+00 : f32
    %11 = vector.broadcast %cst_4 : f32 to vector<1x256xf32>
    %12 = arith.subf %11, %10 : vector<1x256xf32>
    %13 = tpu.iota {dimensions = array<i32: 1>} : vector<1x64xi32>
    %c32_i32 = arith.constant 32 : i32
    %14 = vector.broadcast %c32_i32 : i32 to vector<1x64xi32>
    %15 = arith.cmpi sge, %13, %14 : vector<1x64xi32>
    %16 = arith.extui %15 : vector<1x64xi1> to vector<1x64xi32>
    %c0_5 = arith.constant 0 : index
    %c0_6 = arith.constant 0 : index
    %c0_7 = arith.constant 0 : index
    %17 = vector.load %arg1[%c0_5, %c0_6, %c0_7] : memref<8x8x16xf32, #tpu.memory_space<vmem>>, vector<8x8x16xf32>
    %18 = vector.shape_cast %17 : vector<8x8x16xf32> to vector<64x16xf32>
    %c0_8 = arith.constant 0 : index
    %c0_9 = arith.constant 0 : index
    %19 = vector.load %arg5[%c0_8, %c0_9] : memref<16x256xf32, #tpu.memory_space<vmem>>, vector<16x256xf32>
    %cst_10 = arith.constant dense<0.000000e+00> : vector<64x256xf32>
    %20 = tpu.matmul %18, %19, %cst_10 {dimension_numbers = #tpu.dot_dimension_numbers<[1], [0], [0], [1], [0, 0, 1, 1], [], []>} : vector<64x16xf32>, vector<16x256xf32>, vector<64x256xf32> -> vector<64x256xf32>
    %c0_11 = arith.constant 0 : index
    %c0_12 = arith.constant 0 : index
    %21 = vector.load %arg6[%c0_11, %c0_12] : memref<1x256xf32, #tpu.memory_space<vmem>>, vector<1x256xf32>
    %22 = vector.broadcast %21 : vector<1x256xf32> to vector<64x256xf32>
    %23 = arith.addf %20, %22 : vector<64x256xf32>
    %24 = vector.shape_cast %23 : vector<64x256xf32> to vector<8x8x256xf32>
    %c0_13 = arith.constant 0 : index
    %c0_14 = arith.constant 0 : index
    %c0_15 = arith.constant 0 : index
    %25 = vector.load %arg9[%c0_13, %c0_14, %c0_15] : memref<8x8x256xf32, #tpu.memory_space<vmem>>, vector<8x8x256xf32>
    tpu.vector_store %arg9[%c0_13, %c0_14, %c0_15], %24 {strides = array<i32>} : memref<8x8x256xf32, #tpu.memory_space<vmem>>, vector<8x8x256xf32>,
    %c0_16 = arith.constant 0 : index
    %c0_17 = arith.constant 0 : index
    %26 = vector.load %arg3[%c0_16, %c0_17] : memref<8x64xf32, #tpu.memory_space<vmem>>, vector<8x64xf32>
    %c0_18 = arith.constant 0 : index
    %c0_19 = arith.constant 0 : index
    %27 = vector.load %arg4[%c0_18, %c0_19] : memref<8x64xf32, #tpu.memory_space<vmem>>, vector<8x64xf32>
    %c0_i32 = arith.constant 0 : i32
    %c7_i32 = arith.constant 7 : i32
    %28 = arith.minsi %c0_i32, %c7_i32 : i32
    %29 = arith.index_cast %28 : i32 to index
    %c0_20 = arith.constant 0 : index
    %c0_21 = arith.constant 0 : index
    %30 = vector.load %arg9[%29, %c0_20, %c0_21] : memref<8x8x256xf32, #tpu.memory_space<vmem>>, vector<1x8x256xf32>
    %31 = vector.shape_cast %30 : vector<1x8x256xf32> to vector<8x256xf32>
    %cst_22 = arith.constant dense<0.000000e+00> : vector<8x256xf32>
    %32 = tpu.matmul %26, %0, %cst_22 {dimension_numbers = #tpu.dot_dimension_numbers<[1], [0], [0], [1], [0, 0, 1, 1], [], []>} : vector<8x64xf32>, vector<64x256xf32>, vector<8x256xf32> -> vector<8x256xf32>
    %33 = arith.addf %31, %32 : vector<8x256xf32>
    %34 = vector.broadcast %10 : vector<1x256xf32> to vector<8x256xf32>
    %35 = arith.mulf %33, %34 : vector<8x256xf32>
    %36 = math.tanh %35 : vector<8x256xf32>
    %37 = vector.broadcast %10 : vector<1x256xf32> to vector<8x256xf32>
    %38 = arith.mulf %36, %37 : vector<8x256xf32>
    %39 = vector.broadcast %12 : vector<1x256xf32> to vector<8x256xf32>
    %40 = arith.addf %38, %39 : vector<8x256xf32>
    %41 = vector.extract_strided_slice %40 {offsets = [0, 0], sizes = [8, 64], strides = [1, 1]} : vector<8x256xf32> to vector<8x64xf32>
    %42 = vector.extract_strided_slice %40 {offsets = [0, 64], sizes = [8, 64], strides = [1, 1]} : vector<8x256xf32> to vector<8x64xf32>
    %43 = vector.extract_strided_slice %40 {offsets = [0, 128], sizes = [8, 64], strides = [1, 1]} : vector<8x256xf32> to vector<8x64xf32>
    %44 = vector.extract_strided_slice %40 {offsets = [0, 192], sizes = [8, 64], strides = [1, 1]} : vector<8x256xf32> to vector<8x64xf32>
    %45 = arith.mulf %42, %27 : vector<8x64xf32>
    %46 = arith.mulf %41, %43 : vector<8x64xf32>
    %47 = arith.addf %45, %46 : vector<8x64xf32>
    %48 = math.tanh %47 : vector<8x64xf32>
    %49 = arith.mulf %44, %48 : vector<8x64xf32>
    %50 = vector.broadcast %c0_i32 : i32 to vector<1x64xi32>
    %51 = arith.subi %50, %16 : vector<1x64xi32>
    %c0_i32_23 = arith.constant 0 : i32
    %52 = vector.broadcast %c0_i32_23 : i32 to vector<1x64xi32>
    %53 = arith.cmpi sge, %51, %52 : vector<1x64xi32>
    %54 = vector.broadcast %51 : vector<1x64xi32> to vector<8x64xi32>
    %55 = vector.broadcast %1 : vector<8x1xi32> to vector<8x64xi32>
    %56 = arith.cmpi slt, %54, %55 : vector<8x64xi32>
    %57 = vector.broadcast %53 : vector<1x64xi1> to vector<8x64xi1>
    %58 = arith.andi %57, %56 : vector<8x64xi1>
    %59 = arith.select %58, %49, %26 : vector<8x64xi1>, vector<8x64xf32>
    %60 = arith.select %58, %47, %27 : vector<8x64xi1>, vector<8x64xf32>
    %c1_i32 = arith.constant 1 : i32
    %c7_i32_24 = arith.constant 7 : i32
    %61 = arith.minsi %c1_i32, %c7_i32_24 : i32
    %62 = arith.index_cast %61 : i32 to index
    %c0_25 = arith.constant 0 : index
    %c0_26 = arith.constant 0 : index
    %63 = vector.load %arg9[%62, %c0_25, %c0_26] : memref<8x8x256xf32, #tpu.memory_space<vmem>>, vector<1x8x256xf32>
    %64 = vector.shape_cast %63 : vector<1x8x256xf32> to vector<8x256xf32>
    %cst_27 = arith.constant dense<0.000000e+00> : vector<8x256xf32>
    %65 = tpu.matmul %59, %0, %cst_27 {dimension_numbers = #tpu.dot_dimension_numbers<[1], [0], [0], [1], [0, 0, 1, 1], [], []>} : vector<8x64xf32>, vector<64x256xf32>, vector<8x256xf32> -> vector<8x256xf32>
    %66 = arith.addf %64, %65 : vector<8x256xf32>
    %67 = vector.broadcast %10 : vector<1x256xf32> to vector<8x256xf32>
    %68 = arith.mulf %66, %67 : vector<8x256xf32>
    %69 = math.tanh %68 : vector<8x256xf32>
    %70 = vector.broadcast %10 : vector<1x256xf32> to vector<8x256xf32>
    %71 = arith.mulf %69, %70 : vector<8x256xf32>
    %72 = vector.broadcast %12 : vector<1x256xf32> to vector<8x256xf32>
    %73 = arith.addf %71, %72 : vector<8x256xf32>
    %74 = vector.extract_strided_slice %73 {offsets = [0, 0], sizes = [8, 64], strides = [1, 1]} : vector<8x256xf32> to vector<8x64xf32>
    %75 = vector.extract_strided_slice %73 {offsets = [0, 64], sizes = [8, 64], strides = [1, 1]} : vector<8x256xf32> to vector<8x64xf32>
    %76 = vector.extract_strided_slice %73 {offsets = [0, 128], sizes = [8, 64], strides = [1, 1]} : vector<8x256xf32> to vector<8x64xf32>
    %77 = vector.extract_strided_slice %73 {offsets = [0, 192], sizes = [8, 64], strides = [1, 1]} : vector<8x256xf32> to vector<8x64xf32>
    %78 = arith.mulf %75, %60 : vector<8x64xf32>
    %79 = arith.mulf %74, %76 : vector<8x64xf32>
    %80 = arith.addf %78, %79 : vector<8x64xf32>
    %81 = math.tanh %80 : vector<8x64xf32>
    %82 = arith.mulf %77, %81 : vector<8x64xf32>
    %83 = vector.broadcast %c1_i32 : i32 to vector<1x64xi32>
    %84 = arith.subi %83, %16 : vector<1x64xi32>
    %c0_i32_28 = arith.constant 0 : i32
    %85 = vector.broadcast %c0_i32_28 : i32 to vector<1x64xi32>
    %86 = arith.cmpi sge, %84, %85 : vector<1x64xi32>
    %87 = vector.broadcast %84 : vector<1x64xi32> to vector<8x64xi32>
    %88 = vector.broadcast %1 : vector<8x1xi32> to vector<8x64xi32>
    %89 = arith.cmpi slt, %87, %88 : vector<8x64xi32>
    %90 = vector.broadcast %86 : vector<1x64xi1> to vector<8x64xi1>
    %91 = arith.andi %90, %89 : vector<8x64xi1>
    %92 = arith.select %91, %82, %59 : vector<8x64xi1>, vector<8x64xf32>
    %93 = arith.select %91, %80, %60 : vector<8x64xi1>, vector<8x64xf32>
    %c2_i32 = arith.constant 2 : i32
    %c7_i32_29 = arith.constant 7 : i32
    %94 = arith.minsi %c2_i32, %c7_i32_29 : i32
    %95 = arith.index_cast %94 : i32 to index
    %c0_30 = arith.constant 0 : index
    %c0_31 = arith.constant 0 : index
    %96 = vector.load %arg9[%95, %c0_30, %c0_31] : memref<8x8x256xf32, #tpu.memory_space<vmem>>, vector<1x8x256xf32>
    %97 = vector.shape_cast %96 : vector<1x8x256xf32> to vector<8x256xf32>
    %cst_32 = arith.constant dense<0.000000e+00> : vector<8x256xf32>
    %98 = tpu.matmul %92, %0, %cst_32 {dimension_numbers = #tpu.dot_dimension_numbers<[1], [0], [0], [1], [0, 0, 1, 1], [], []>} : vector<8x64xf32>, vector<64x256xf32>, vector<8x256xf32> -> vector<8x256xf32>
    %99 = arith.addf %97, %98 : vector<8x256xf32>
    %100 = vector.broadcast %10 : vector<1x256xf32> to vector<8x256xf32>
    %101 = arith.mulf %99, %100 : vector<8x256xf32>
    %102 = math.tanh %101 : vector<8x256xf32>
    %103 = vector.broadcast %10 : vector<1x256xf32> to vector<8x256xf32>
    %104 = arith.mulf %102, %103 : vector<8x256xf32>
    %105 = vector.broadcast %12 : vector<1x256xf32> to vector<8x256xf32>
    %106 = arith.addf %104, %105 : vector<8x256xf32>
    %107 = vector.extract_strided_slice %106 {offsets = [0, 0], sizes = [8, 64], strides = [1, 1]} : vector<8x256xf32> to vector<8x64xf32>
    %108 = vector.extract_strided_slice %106 {offsets = [0, 64], sizes = [8, 64], strides = [1, 1]} : vector<8x256xf32> to vector<8x64xf32>
    %109 = vector.extract_strided_slice %106 {offsets = [0, 128], sizes = [8, 64], strides = [1, 1]} : vector<8x256xf32> to vector<8x64xf32>
    %110 = vector.extract_strided_slice %106 {offsets = [0, 192], sizes = [8, 64], strides = [1, 1]} : vector<8x256xf32> to vector<8x64xf32>
    %111 = arith.mulf %108, %93 : vector<8x64xf32>
    %112 = arith.mulf %107, %109 : vector<8x64xf32>
    %113 = arith.addf %111, %112 : vector<8x64xf32>
    %114 = math.tanh %113 : vector<8x64xf32>
    %115 = arith.mulf %110, %114 : vector<8x64xf32>
    %116 = vector.broadcast %c2_i32 : i32 to vector<1x64xi32>
    %117 = arith.subi %116, %16 : vector<1x64xi32>
    %c0_i32_33 = arith.constant 0 : i32
    %118 = vector.broadcast %c0_i32_33 : i32 to vector<1x64xi32>
    %119 = arith.cmpi sge, %117, %118 : vector<1x64xi32>
    %120 = vector.broadcast %117 : vector<1x64xi32> to vector<8x64xi32>
    %121 = vector.broadcast %1 : vector<8x1xi32> to vector<8x64xi32>
    %122 = arith.cmpi slt, %120, %121 : vector<8x64xi32>
    %123 = vector.broadcast %119 : vector<1x64xi1> to vector<8x64xi1>
    %124 = arith.andi %123, %122 : vector<8x64xi1>
    %125 = arith.select %124, %115, %92 : vector<8x64xi1>, vector<8x64xf32>
    %126 = arith.select %124, %113, %93 : vector<8x64xi1>, vector<8x64xf32>
    %c3_i32 = arith.constant 3 : i32
    %c7_i32_34 = arith.constant 7 : i32
    %127 = arith.minsi %c3_i32, %c7_i32_34 : i32
    %128 = arith.index_cast %127 : i32 to index
    %c0_35 = arith.constant 0 : index
    %c0_36 = arith.constant 0 : index
    %129 = vector.load %arg9[%128, %c0_35, %c0_36] : memref<8x8x256xf32, #tpu.memory_space<vmem>>, vector<1x8x256xf32>
    %130 = vector.shape_cast %129 : vector<1x8x256xf32> to vector<8x256xf32>
    %cst_37 = arith.constant dense<0.000000e+00> : vector<8x256xf32>
    %131 = tpu.matmul %125, %0, %cst_37 {dimension_numbers = #tpu.dot_dimension_numbers<[1], [0], [0], [1], [0, 0, 1, 1], [], []>} : vector<8x64xf32>, vector<64x256xf32>, vector<8x256xf32> -> vector<8x256xf32>
    %132 = arith.addf %130, %131 : vector<8x256xf32>
    %133 = vector.broadcast %10 : vector<1x256xf32> to vector<8x256xf32>
    %134 = arith.mulf %132, %133 : vector<8x256xf32>
    %135 = math.tanh %134 : vector<8x256xf32>
    %136 = vector.broadcast %10 : vector<1x256xf32> to vector<8x256xf32>
    %137 = arith.mulf %135, %136 : vector<8x256xf32>
    %138 = vector.broadcast %12 : vector<1x256xf32> to vector<8x256xf32>
    %139 = arith.addf %137, %138 : vector<8x256xf32>
    %140 = vector.extract_strided_slice %139 {offsets = [0, 0], sizes = [8, 64], strides = [1, 1]} : vector<8x256xf32> to vector<8x64xf32>
    %141 = vector.extract_strided_slice %139 {offsets = [0, 64], sizes = [8, 64], strides = [1, 1]} : vector<8x256xf32> to vector<8x64xf32>
    %142 = vector.extract_strided_slice %139 {offsets = [0, 128], sizes = [8, 64], strides = [1, 1]} : vector<8x256xf32> to vector<8x64xf32>
    %143 = vector.extract_strided_slice %139 {offsets = [0, 192], sizes = [8, 64], strides = [1, 1]} : vector<8x256xf32> to vector<8x64xf32>
    %144 = arith.mulf %141, %126 : vector<8x64xf32>
    %145 = arith.mulf %140, %142 : vector<8x64xf32>
    %146 = arith.addf %144, %145 : vector<8x64xf32>
    %147 = math.tanh %146 : vector<8x64xf32>
    %148 = arith.mulf %143, %147 : vector<8x64xf32>
    %149 = vector.broadcast %c3_i32 : i32 to vector<1x64xi32>
    %150 = arith.subi %149, %16 : vector<1x64xi32>
    %c0_i32_38 = arith.constant 0 : i32
    %151 = vector.broadcast %c0_i32_38 : i32 to vector<1x64xi32>
    %152 = arith.cmpi sge, %150, %151 : vector<1x64xi32>
    %153 = vector.broadcast %150 : vector<1x64xi32> to vector<8x64xi32>
    %154 = vector.broadcast %1 : vector<8x1xi32> to vector<8x64xi32>
    %155 = arith.cmpi slt, %153, %154 : vector<8x64xi32>
    %156 = vector.broadcast %152 : vector<1x64xi1> to vector<8x64xi1>
    %157 = arith.andi %156, %155 : vector<8x64xi1>
    %158 = arith.select %157, %148, %125 : vector<8x64xi1>, vector<8x64xf32>
    %159 = arith.select %157, %146, %126 : vector<8x64xi1>, vector<8x64xf32>
    %c4_i32 = arith.constant 4 : i32
    %c7_i32_39 = arith.constant 7 : i32
    %160 = arith.minsi %c4_i32, %c7_i32_39 : i32
    %161 = arith.index_cast %160 : i32 to index
    %c0_40 = arith.constant 0 : index
    %c0_41 = arith.constant 0 : index
    %162 = vector.load %arg9[%161, %c0_40, %c0_41] : memref<8x8x256xf32, #tpu.memory_space<vmem>>, vector<1x8x256xf32>
    %163 = vector.shape_cast %162 : vector<1x8x256xf32> to vector<8x256xf32>
    %cst_42 = arith.constant dense<0.000000e+00> : vector<8x256xf32>
    %164 = tpu.matmul %158, %0, %cst_42 {dimension_numbers = #tpu.dot_dimension_numbers<[1], [0], [0], [1], [0, 0, 1, 1], [], []>} : vector<8x64xf32>, vector<64x256xf32>, vector<8x256xf32> -> vector<8x256xf32>
    %165 = arith.addf %163, %164 : vector<8x256xf32>
    %166 = vector.broadcast %10 : vector<1x256xf32> to vector<8x256xf32>
    %167 = arith.mulf %165, %166 : vector<8x256xf32>
    %168 = math.tanh %167 : vector<8x256xf32>
    %169 = vector.broadcast %10 : vector<1x256xf32> to vector<8x256xf32>
    %170 = arith.mulf %168, %169 : vector<8x256xf32>
    %171 = vector.broadcast %12 : vector<1x256xf32> to vector<8x256xf32>
    %172 = arith.addf %170, %171 : vector<8x256xf32>
    %173 = vector.extract_strided_slice %172 {offsets = [0, 0], sizes = [8, 64], strides = [1, 1]} : vector<8x256xf32> to vector<8x64xf32>
    %174 = vector.extract_strided_slice %172 {offsets = [0, 64], sizes = [8, 64], strides = [1, 1]} : vector<8x256xf32> to vector<8x64xf32>
    %175 = vector.extract_strided_slice %172 {offsets = [0, 128], sizes = [8, 64], strides = [1, 1]} : vector<8x256xf32> to vector<8x64xf32>
    %176 = vector.extract_strided_slice %172 {offsets = [0, 192], sizes = [8, 64], strides = [1, 1]} : vector<8x256xf32> to vector<8x64xf32>
    %177 = arith.mulf %174, %159 : vector<8x64xf32>
    %178 = arith.mulf %173, %175 : vector<8x64xf32>
    %179 = arith.addf %177, %178 : vector<8x64xf32>
    %180 = math.tanh %179 : vector<8x64xf32>
    %181 = arith.mulf %176, %180 : vector<8x64xf32>
    %182 = vector.broadcast %c4_i32 : i32 to vector<1x64xi32>
    %183 = arith.subi %182, %16 : vector<1x64xi32>
    %c0_i32_43 = arith.constant 0 : i32
    %184 = vector.broadcast %c0_i32_43 : i32 to vector<1x64xi32>
    %185 = arith.cmpi sge, %183, %184 : vector<1x64xi32>
    %186 = vector.broadcast %183 : vector<1x64xi32> to vector<8x64xi32>
    %187 = vector.broadcast %1 : vector<8x1xi32> to vector<8x64xi32>
    %188 = arith.cmpi slt, %186, %187 : vector<8x64xi32>
    %189 = vector.broadcast %185 : vector<1x64xi1> to vector<8x64xi1>
    %190 = arith.andi %189, %188 : vector<8x64xi1>
    %191 = arith.select %190, %181, %158 : vector<8x64xi1>, vector<8x64xf32>
    %192 = arith.select %190, %179, %159 : vector<8x64xi1>, vector<8x64xf32>
    %c5_i32 = arith.constant 5 : i32
    %c7_i32_44 = arith.constant 7 : i32
    %193 = arith.minsi %c5_i32, %c7_i32_44 : i32
    %194 = arith.index_cast %193 : i32 to index
    %c0_45 = arith.constant 0 : index
    %c0_46 = arith.constant 0 : index
    %195 = vector.load %arg9[%194, %c0_45, %c0_46] : memref<8x8x256xf32, #tpu.memory_space<vmem>>, vector<1x8x256xf32>
    %196 = vector.shape_cast %195 : vector<1x8x256xf32> to vector<8x256xf32>
    %cst_47 = arith.constant dense<0.000000e+00> : vector<8x256xf32>
    %197 = tpu.matmul %191, %0, %cst_47 {dimension_numbers = #tpu.dot_dimension_numbers<[1], [0], [0], [1], [0, 0, 1, 1], [], []>} : vector<8x64xf32>, vector<64x256xf32>, vector<8x256xf32> -> vector<8x256xf32>
    %198 = arith.addf %196, %197 : vector<8x256xf32>
    %199 = vector.broadcast %10 : vector<1x256xf32> to vector<8x256xf32>
    %200 = arith.mulf %198, %199 : vector<8x256xf32>
    %201 = math.tanh %200 : vector<8x256xf32>
    %202 = vector.broadcast %10 : vector<1x256xf32> to vector<8x256xf32>
    %203 = arith.mulf %201, %202 : vector<8x256xf32>
    %204 = vector.broadcast %12 : vector<1x256xf32> to vector<8x256xf32>
    %205 = arith.addf %203, %204 : vector<8x256xf32>
    %206 = vector.extract_strided_slice %205 {offsets = [0, 0], sizes = [8, 64], strides = [1, 1]} : vector<8x256xf32> to vector<8x64xf32>
    %207 = vector.extract_strided_slice %205 {offsets = [0, 64], sizes = [8, 64], strides = [1, 1]} : vector<8x256xf32> to vector<8x64xf32>
    %208 = vector.extract_strided_slice %205 {offsets = [0, 128], sizes = [8, 64], strides = [1, 1]} : vector<8x256xf32> to vector<8x64xf32>
    %209 = vector.extract_strided_slice %205 {offsets = [0, 192], sizes = [8, 64], strides = [1, 1]} : vector<8x256xf32> to vector<8x64xf32>
    %210 = arith.mulf %207, %192 : vector<8x64xf32>
    %211 = arith.mulf %206, %208 : vector<8x64xf32>
    %212 = arith.addf %210, %211 : vector<8x64xf32>
    %213 = math.tanh %212 : vector<8x64xf32>
    %214 = arith.mulf %209, %213 : vector<8x64xf32>
    %215 = vector.broadcast %c5_i32 : i32 to vector<1x64xi32>
    %216 = arith.subi %215, %16 : vector<1x64xi32>
    %c0_i32_48 = arith.constant 0 : i32
    %217 = vector.broadcast %c0_i32_48 : i32 to vector<1x64xi32>
    %218 = arith.cmpi sge, %216, %217 : vector<1x64xi32>
    %219 = vector.broadcast %216 : vector<1x64xi32> to vector<8x64xi32>
    %220 = vector.broadcast %1 : vector<8x1xi32> to vector<8x64xi32>
    %221 = arith.cmpi slt, %219, %220 : vector<8x64xi32>
    %222 = vector.broadcast %218 : vector<1x64xi1> to vector<8x64xi1>
    %223 = arith.andi %222, %221 : vector<8x64xi1>
    %224 = arith.select %223, %214, %191 : vector<8x64xi1>, vector<8x64xf32>
    %225 = arith.select %223, %212, %192 : vector<8x64xi1>, vector<8x64xf32>
    %c6_i32 = arith.constant 6 : i32
    %c7_i32_49 = arith.constant 7 : i32
    %226 = arith.minsi %c6_i32, %c7_i32_49 : i32
    %227 = arith.index_cast %226 : i32 to index
    %c0_50 = arith.constant 0 : index
    %c0_51 = arith.constant 0 : index
    %228 = vector.load %arg9[%227, %c0_50, %c0_51] : memref<8x8x256xf32, #tpu.memory_space<vmem>>, vector<1x8x256xf32>
    %229 = vector.shape_cast %228 : vector<1x8x256xf32> to vector<8x256xf32>
    %cst_52 = arith.constant dense<0.000000e+00> : vector<8x256xf32>
    %230 = tpu.matmul %224, %0, %cst_52 {dimension_numbers = #tpu.dot_dimension_numbers<[1], [0], [0], [1], [0, 0, 1, 1], [], []>} : vector<8x64xf32>, vector<64x256xf32>, vector<8x256xf32> -> vector<8x256xf32>
    %231 = arith.addf %229, %230 : vector<8x256xf32>
    %232 = vector.broadcast %10 : vector<1x256xf32> to vector<8x256xf32>
    %233 = arith.mulf %231, %232 : vector<8x256xf32>
    %234 = math.tanh %233 : vector<8x256xf32>
    %235 = vector.broadcast %10 : vector<1x256xf32> to vector<8x256xf32>
    %236 = arith.mulf %234, %235 : vector<8x256xf32>
    %237 = vector.broadcast %12 : vector<1x256xf32> to vector<8x256xf32>
    %238 = arith.addf %236, %237 : vector<8x256xf32>
    %239 = vector.extract_strided_slice %238 {offsets = [0, 0], sizes = [8, 64], strides = [1, 1]} : vector<8x256xf32> to vector<8x64xf32>
    %240 = vector.extract_strided_slice %238 {offsets = [0, 64], sizes = [8, 64], strides = [1, 1]} : vector<8x256xf32> to vector<8x64xf32>
    %241 = vector.extract_strided_slice %238 {offsets = [0, 128], sizes = [8, 64], strides = [1, 1]} : vector<8x256xf32> to vector<8x64xf32>
    %242 = vector.extract_strided_slice %238 {offsets = [0, 192], sizes = [8, 64], strides = [1, 1]} : vector<8x256xf32> to vector<8x64xf32>
    %243 = arith.mulf %240, %225 : vector<8x64xf32>
    %244 = arith.mulf %239, %241 : vector<8x64xf32>
    %245 = arith.addf %243, %244 : vector<8x64xf32>
    %246 = math.tanh %245 : vector<8x64xf32>
    %247 = arith.mulf %242, %246 : vector<8x64xf32>
    %248 = vector.broadcast %c6_i32 : i32 to vector<1x64xi32>
    %249 = arith.subi %248, %16 : vector<1x64xi32>
    %c0_i32_53 = arith.constant 0 : i32
    %250 = vector.broadcast %c0_i32_53 : i32 to vector<1x64xi32>
    %251 = arith.cmpi sge, %249, %250 : vector<1x64xi32>
    %252 = vector.broadcast %249 : vector<1x64xi32> to vector<8x64xi32>
    %253 = vector.broadcast %1 : vector<8x1xi32> to vector<8x64xi32>
    %254 = arith.cmpi slt, %252, %253 : vector<8x64xi32>
    %255 = vector.broadcast %251 : vector<1x64xi1> to vector<8x64xi1>
    %256 = arith.andi %255, %254 : vector<8x64xi1>
    %257 = arith.select %256, %247, %224 : vector<8x64xi1>, vector<8x64xf32>
    %258 = arith.select %256, %245, %225 : vector<8x64xi1>, vector<8x64xf32>
    %c7_i32_54 = arith.constant 7 : i32
    %c7_i32_55 = arith.constant 7 : i32
    %259 = arith.minsi %c7_i32_54, %c7_i32_55 : i32
    %260 = arith.index_cast %259 : i32 to index
    %c0_56 = arith.constant 0 : index
    %c0_57 = arith.constant 0 : index
    %261 = vector.load %arg9[%260, %c0_56, %c0_57] : memref<8x8x256xf32, #tpu.memory_space<vmem>>, vector<1x8x256xf32>
    %262 = vector.shape_cast %261 : vector<1x8x256xf32> to vector<8x256xf32>
    %cst_58 = arith.constant dense<0.000000e+00> : vector<8x256xf32>
    %263 = tpu.matmul %257, %0, %cst_58 {dimension_numbers = #tpu.dot_dimension_numbers<[1], [0], [0], [1], [0, 0, 1, 1], [], []>} : vector<8x64xf32>, vector<64x256xf32>, vector<8x256xf32> -> vector<8x256xf32>
    %264 = arith.addf %262, %263 : vector<8x256xf32>
    %265 = vector.broadcast %10 : vector<1x256xf32> to vector<8x256xf32>
    %266 = arith.mulf %264, %265 : vector<8x256xf32>
    %267 = math.tanh %266 : vector<8x256xf32>
    %268 = vector.broadcast %10 : vector<1x256xf32> to vector<8x256xf32>
    %269 = arith.mulf %267, %268 : vector<8x256xf32>
    %270 = vector.broadcast %12 : vector<1x256xf32> to vector<8x256xf32>
    %271 = arith.addf %269, %270 : vector<8x256xf32>
    %272 = vector.extract_strided_slice %271 {offsets = [0, 0], sizes = [8, 64], strides = [1, 1]} : vector<8x256xf32> to vector<8x64xf32>
    %273 = vector.extract_strided_slice %271 {offsets = [0, 64], sizes = [8, 64], strides = [1, 1]} : vector<8x256xf32> to vector<8x64xf32>
    %274 = vector.extract_strided_slice %271 {offsets = [0, 128], sizes = [8, 64], strides = [1, 1]} : vector<8x256xf32> to vector<8x64xf32>
    %275 = vector.extract_strided_slice %271 {offsets = [0, 192], sizes = [8, 64], strides = [1, 1]} : vector<8x256xf32> to vector<8x64xf32>
    %276 = arith.mulf %273, %258 : vector<8x64xf32>
    %277 = arith.mulf %272, %274 : vector<8x64xf32>
    %278 = arith.addf %276, %277 : vector<8x64xf32>
    %279 = math.tanh %278 : vector<8x64xf32>
    %280 = arith.mulf %275, %279 : vector<8x64xf32>
    %281 = vector.broadcast %c7_i32_54 : i32 to vector<1x64xi32>
    %282 = arith.subi %281, %16 : vector<1x64xi32>
    %c0_i32_59 = arith.constant 0 : i32
    %283 = vector.broadcast %c0_i32_59 : i32 to vector<1x64xi32>
    %284 = arith.cmpi sge, %282, %283 : vector<1x64xi32>
    %285 = vector.broadcast %282 : vector<1x64xi32> to vector<8x64xi32>
    %286 = vector.broadcast %1 : vector<8x1xi32> to vector<8x64xi32>
    %287 = arith.cmpi slt, %285, %286 : vector<8x64xi32>
    %288 = vector.broadcast %284 : vector<1x64xi1> to vector<8x64xi1>
    %289 = arith.andi %288, %287 : vector<8x64xi1>
    %290 = arith.select %289, %280, %257 : vector<8x64xi1>, vector<8x64xf32>
    %291 = arith.select %289, %278, %258 : vector<8x64xi1>, vector<8x64xf32>
    %c8_i32 = arith.constant 8 : i32
    %c7_i32_60 = arith.constant 7 : i32
    %292 = arith.minsi %c8_i32, %c7_i32_60 : i32
    %293 = arith.index_cast %292 : i32 to index
    %c0_61 = arith.constant 0 : index
    %c0_62 = arith.constant 0 : index
    %294 = vector.load %arg9[%293, %c0_61, %c0_62] : memref<8x8x256xf32, #tpu.memory_space<vmem>>, vector<1x8x256xf32>
    %295 = vector.shape_cast %294 : vector<1x8x256xf32> to vector<8x256xf32>
    %cst_63 = arith.constant dense<0.000000e+00> : vector<8x256xf32>
    %296 = tpu.matmul %290, %0, %cst_63 {dimension_numbers = #tpu.dot_dimension_numbers<[1], [0], [0], [1], [0, 0, 1, 1], [], []>} : vector<8x64xf32>, vector<64x256xf32>, vector<8x256xf32> -> vector<8x256xf32>
    %297 = arith.addf %295, %296 : vector<8x256xf32>
    %298 = vector.broadcast %10 : vector<1x256xf32> to vector<8x256xf32>
    %299 = arith.mulf %297, %298 : vector<8x256xf32>
    %300 = math.tanh %299 : vector<8x256xf32>
    %301 = vector.broadcast %10 : vector<1x256xf32> to vector<8x256xf32>
    %302 = arith.mulf %300, %301 : vector<8x256xf32>
    %303 = vector.broadcast %12 : vector<1x256xf32> to vector<8x256xf32>
    %304 = arith.addf %302, %303 : vector<8x256xf32>
    %305 = vector.extract_strided_slice %304 {offsets = [0, 0], sizes = [8, 64], strides = [1, 1]} : vector<8x256xf32> to vector<8x64xf32>
    %306 = vector.extract_strided_slice %304 {offsets = [0, 64], sizes = [8, 64], strides = [1, 1]} : vector<8x256xf32> to vector<8x64xf32>
    %307 = vector.extract_strided_slice %304 {offsets = [0, 128], sizes = [8, 64], strides = [1, 1]} : vector<8x256xf32> to vector<8x64xf32>
    %308 = vector.extract_strided_slice %304 {offsets = [0, 192], sizes = [8, 64], strides = [1, 1]} : vector<8x256xf32> to vector<8x64xf32>
    %309 = arith.mulf %306, %291 : vector<8x64xf32>
    %310 = arith.mulf %305, %307 : vector<8x64xf32>
    %311 = arith.addf %309, %310 : vector<8x64xf32>
    %312 = math.tanh %311 : vector<8x64xf32>
    %313 = arith.mulf %308, %312 : vector<8x64xf32>
    %314 = vector.broadcast %c8_i32 : i32 to vector<1x64xi32>
    %315 = arith.subi %314, %16 : vector<1x64xi32>
    %c0_i32_64 = arith.constant 0 : i32
    %316 = vector.broadcast %c0_i32_64 : i32 to vector<1x64xi32>
    %317 = arith.cmpi sge, %315, %316 : vector<1x64xi32>
    %318 = vector.broadcast %315 : vector<1x64xi32> to vector<8x64xi32>
    %319 = vector.broadcast %1 : vector<8x1xi32> to vector<8x64xi32>
    %320 = arith.cmpi slt, %318, %319 : vector<8x64xi32>
    %321 = vector.broadcast %317 : vector<1x64xi1> to vector<8x64xi1>
    %322 = arith.andi %321, %320 : vector<8x64xi1>
    %323 = arith.select %322, %313, %290 : vector<8x64xi1>, vector<8x64xf32>
    %324 = arith.select %322, %311, %291 : vector<8x64xi1>, vector<8x64xf32>
    %c9_i32 = arith.constant 9 : i32
    %c0_65 = arith.constant 0 : index
    %c0_66 = arith.constant 0 : index
    %325 = vector.load %arg8[%c0_65, %c0_66] : memref<8x64xf32, #tpu.memory_space<vmem>>, vector<8x64xf32>
    tpu.vector_store %arg8[%c0_65, %c0_66], %323 {strides = array<i32>} : memref<8x64xf32, #tpu.memory_space<vmem>>, vector<8x64xf32>,
    return
  }
  func.func @transform_0(%arg0: i32) -> (i32, i32, i32) {
    %c0_i32 = arith.constant 0 : i32
    %c0_i32_0 = arith.constant 0 : i32
    %c0_i32_1 = arith.constant 0 : i32
    return %c0_i32, %arg0, %c0_i32_0 : i32, i32, i32
  }
  func.func @transform_1(%arg0: i32) -> (i32, i32) {
    %c0_i32 = arith.constant 0 : i32
    %c0_i32_0 = arith.constant 0 : i32
    return %arg0, %c0_i32 : i32, i32
  }
  func.func @transform_2(%arg0: i32) -> (i32, i32) {
    %c0_i32 = arith.constant 0 : i32
    %c0_i32_0 = arith.constant 0 : i32
    return %arg0, %c0_i32 : i32, i32
  }
  func.func @transform_3(%arg0: i32) -> (i32, i32) {
    %c0_i32 = arith.constant 0 : i32
    %c0_i32_0 = arith.constant 0 : i32
    return %arg0, %c0_i32 : i32, i32
  }
  func.func @transform_4(%arg0: i32) -> (i32, i32) {
    %c0_i32 = arith.constant 0 : i32
    %c0_i32_0 = arith.constant 0 : i32
    %c0_i32_1 = arith.constant 0 : i32
    return %c0_i32, %c0_i32_0 : i32, i32
  }
  func.func @transform_5(%arg0: i32) -> (i32, i32) {
    %c0_i32 = arith.constant 0 : i32
    %c0_i32_0 = arith.constant 0 : i32
    %c0_i32_1 = arith.constant 0 : i32
    return %c0_i32, %c0_i32_0 : i32, i32
  }
  func.func @transform_6(%arg0: i32) -> (i32, i32) {
    %c0_i32 = arith.constant 0 : i32
    %c0_i32_0 = arith.constant 0 : i32
    %c0_i32_1 = arith.constant 0 : i32
    return %c0_i32, %c0_i32_0 : i32, i32
  }
  func.func @transform_7(%arg0: i32) -> (i32, i32) {
    %c0_i32 = arith.constant 0 : i32
    %c0_i32_0 = arith.constant 0 : i32
    return %arg0, %c0_i32 : i32, i32
  }
}

</mosaic_0001>

<llo_original>
// kernel: tpu_custom_call.1
$region0: #{tpu_custom_call.1}
  #allocation0 [shape = 'u32[]', space=smem, size = 0x4, offset = 0x4, fixed_abs, tag = 'smem constant byte address 0x4 - core index']
  #allocation1 [shape = 'u32[144,128]{1,0:T(1,128)}', space=vmem, size = 0x12000, scoped, tag = 'internal scratch']
  #allocation2 [shape = 'f32[8,8,256]{2,1,0:T(8,128)}', space=vmem, size = 0x10000, scoped, tag = 'scratch operand']
  %s0 = inlined_call_operand.hbm [shape: f32[8,8,16], index: 0, kind: input, shape index: {}]
  %s1 = inlined_call_operand.vmem [shape: s32[8,1], index: 1, kind: input, shape index: {}]
  %s2 = inlined_call_operand.vmem [shape: f32[8,64], index: 2, kind: input, shape index: {}]
  %s3 = inlined_call_operand.vmem [shape: f32[8,64], index: 3, kind: input, shape index: {}]
  %s4 = inlined_call_operand.hbm [shape: f32[16,256], index: 4, kind: input, shape index: {}]
  %s5 = inlined_call_operand.vmem [shape: f32[1,256], index: 5, kind: input, shape index: {}]
  %s6 = inlined_call_operand.hbm [shape: f32[64,256], index: 6, kind: input, shape index: {}]
  %s7 = inlined_call_operand.hbm [shape: f32[8,64], index: 7, kind: output, shape index: {}]
  %s8 = sld [smem:[#allocation0]]
  $region50: #{tpu_custom_call.1} parent=0
    _
  %s10 = ssub.s32 1, %s8
  %s11 = scalar_select 0, %s10, %s8
  $region1: #{tpu_custom_call.1} parent=0
    #allocation3 [shape = 'u8[32768]{0}', space=vmem, size = 0x8000, scoped, tag = 'input window, operand 0, single buffered']
    #allocation4 [shape = 's32[1]{0}', space=sflag, size = 0x4, scoped, tag = 'scoped memory for tpu_custom_call.1']
    #allocation5 [shape = 's32[1]{0}', space=sflag, size = 0x4, scoped, tag = 'scoped memory for tpu_custom_call.1']
    #allocation6 [shape = 'u8[16384]{0}', space=vmem, size = 0x4000, scoped, tag = 'input window, operand 4, single buffered']
    #allocation7 [shape = 's32[1]{0}', space=sflag, size = 0x4, scoped, tag = 'scoped memory for tpu_custom_call.1']
    #allocation8 [shape = 'u8[65536]{0}', space=vmem, size = 0x10000, scoped, tag = 'input window, operand 6, single buffered']
    #allocation9 [shape = 'u8[4096]{0}', space=vmem, size = 0x1000, scoped, tag = 'output window, operand 0, single buffered']
    %12 = vsyncpa [#allocation4], 0
    %13 = vsyncpa [#allocation7], 0
    %14 = vsyncpa [#allocation5], 0
    // Predicated region
    $region2: #{tpu_custom_call.1} parent=1 // pred_check
      _
    $region3: #{tpu_custom_call.1} parent=1 // pred_check_branch
      %16 = sbr.rel (0) target = $region5
    $region4: #{tpu_custom_call.1} parent=1 // pred_region
      %s18 = ssub.s32 1024, 1024
      %19 = vsyncadd [#allocation4], %s18
      %s20 = sshll.u32 [#allocation3], 4
      %s21 = int_to_ptr.vmem [resolvable:$true] %s20
      %26 = dma.hbm_to_vmem [thread:$0]  %s0, 1024, %s21, [#allocation4], 128, 128, 8
    $region5: #{tpu_custom_call.1} parent=1 // pred_fallthru
      _
    // Predicated region
    $region6: #{tpu_custom_call.1} parent=1 // pred_check
      _
    $region7: #{tpu_custom_call.1} parent=1 // pred_check_branch
      %28 = sbr.rel (0) target = $region9
    $region8: #{tpu_custom_call.1} parent=1 // pred_region
      _
    $region9: #{tpu_custom_call.1} parent=1 // pred_fallthru
      _
    // Predicated region
    $region10: #{tpu_custom_call.1} parent=1 // pred_check
      _
    $region11: #{tpu_custom_call.1} parent=1 // pred_check_branch
      %30 = sbr.rel (0) target = $region13
    $region12: #{tpu_custom_call.1} parent=1 // pred_region
      _
    $region13: #{tpu_custom_call.1} parent=1 // pred_fallthru
      _
    // Predicated region
    $region14: #{tpu_custom_call.1} parent=1 // pred_check
      _
    $region15: #{tpu_custom_call.1} parent=1 // pred_check_branch
      %32 = sbr.rel (0) target = $region17
    $region16: #{tpu_custom_call.1} parent=1 // pred_region
      _
    $region17: #{tpu_custom_call.1} parent=1 // pred_fallthru
      _
    // Predicated region
    $region18: #{tpu_custom_call.1} parent=1 // pred_check
      _
    $region19: #{tpu_custom_call.1} parent=1 // pred_check_branch
      %34 = sbr.rel (0) target = $region21
    $region20: #{tpu_custom_call.1} parent=1 // pred_region
      %s36 = ssub.s32 512, 512
      %37 = vsyncadd [#allocation7], %s36
      %s38 = sshll.u32 [#allocation6], 4
      %s39 = int_to_ptr.vmem [resolvable:$true] %s38
      %44 = dma.hbm_to_vmem [thread:$0]  %s4, 512, %s39, [#allocation7], 256, 256, 16
    $region21: #{tpu_custom_call.1} parent=1 // pred_fallthru
      _
    // Predicated region
    $region22: #{tpu_custom_call.1} parent=1 // pred_check
      _
    $region23: #{tpu_custom_call.1} parent=1 // pred_check_branch
      %46 = sbr.rel (0) target = $region25
    $region24: #{tpu_custom_call.1} parent=1 // pred_region
      _
    $region25: #{tpu_custom_call.1} parent=1 // pred_fallthru
      _
    // Predicated region
    $region26: #{tpu_custom_call.1} parent=1 // pred_check
      _
    $region27: #{tpu_custom_call.1} parent=1 // pred_check_branch
      %48 = sbr.rel (0) target = $region29
    $region28: #{tpu_custom_call.1} parent=1 // pred_region
      %s50 = ssub.s32 2048, 2048
      %51 = vsyncadd [#allocation7], %s50
      %s52 = sshll.u32 [#allocation8], 4
      %s53 = int_to_ptr.vmem [resolvable:$true] %s52
      %58 = dma.hbm_to_vmem [thread:$0]  %s6, 2048, %s53, [#allocation7], 256, 256, 16
    $region29: #{tpu_custom_call.1} parent=1 // pred_fallthru
      _
    // Predicated region
    $region30: #{tpu_custom_call.1} parent=1 // pred_check
      _
    $region31: #{tpu_custom_call.1} parent=1 // pred_check_branch
      %60 = sbr.rel (0) target = $region33
    $region32: #{tpu_custom_call.1} parent=1 // pred_region
      %61 = dma.done [#allocation4], 1024
    $region33: #{tpu_custom_call.1} parent=1 // pred_fallthru
      _
    // Predicated region
    $region34: #{tpu_custom_call.1} parent=1 // pred_check
      _
    $region35: #{tpu_custom_call.1} parent=1 // pred_check_branch
      %63 = sbr.rel (0) target = $region37
    $region36: #{tpu_custom_call.1} parent=1 // pred_region
      %64 = dma.done [#allocation7], 512
    $region37: #{tpu_custom_call.1} parent=1 // pred_fallthru
      _
    // Predicated region
    $region38: #{tpu_custom_call.1} parent=1 // pred_check
      _
    $region39: #{tpu_custom_call.1} parent=1 // pred_check_branch
      %66 = sbr.rel (0) target = $region41
    $region40: #{tpu_custom_call.1} parent=1 // pred_region
      %67 = dma.done [#allocation7], 2048
    $region41: #{tpu_custom_call.1} parent=1 // pred_fallthru
      _
    %v68 = vld [vmem:[#allocation8] sm:$0xff]
    %v69 = vld [vmem:[#allocation8 + $0x8] sm:$0xff]
    %v70 = vld [vmem:[#allocation8 + $0x10] sm:$0xff]
    %v71 = vld [vmem:[#allocation8 + $0x18] sm:$0xff]
    %v72 = vld [vmem:[#allocation8 + $0x20] sm:$0xff]
    %v73 = vld [vmem:[#allocation8 + $0x28] sm:$0xff]
    %v74 = vld [vmem:[#allocation8 + $0x30] sm:$0xff]
    %v75 = vld [vmem:[#allocation8 + $0x38] sm:$0xff]
    %v76 = vld [vmem:[#allocation8 + $0x40] sm:$0xff]
    %v77 = vld [vmem:[#allocation8 + $0x48] sm:$0xff]
    %v78 = vld [vmem:[#allocation8 + $0x50] sm:$0xff]
    %v79 = vld [vmem:[#allocation8 + $0x58] sm:$0xff]
    %v80 = vld [vmem:[#allocation8 + $0x60] sm:$0xff]
    %v81 = vld [vmem:[#allocation8 + $0x68] sm:$0xff]
    %v82 = vld [vmem:[#allocation8 + $0x70] sm:$0xff]
    %v83 = vld [vmem:[#allocation8 + $0x78] sm:$0xff]
    %v84 = vld [vmem:[%s1] sm:$0xff]
    %v85 = vlaneseq
    %v86 = vand.u32 %v85, 127
    %v87 = vadd.s32 %v86, 128
    %vm88 = vcmp.ge.s32.totalorder %v86, 128
    %vm89 = vcmp.ge.s32.totalorder %v87, 128
    %vm90 = vcmp.lt.s32.totalorder %v86, 192
    %vm91 = vcmp.lt.s32.totalorder %v87, 192
    %vm92 = vmand %vm88, %vm90
    %vm93 = vmand %vm89, %vm91
    %v94 = vsel %vm92, 1.0, 0.5
    %v95 = vsel %vm93, 1.0, 0.5
    %v96 = vsub.f32 1.0, %v94
    %v97 = vsub.f32 1.0, %v95
    %vm98 = vcmp.ge.s32.totalorder %v86, 32
    %v99 = vsel %vm98, 1, 0
    %v100 = vld [vmem:[#allocation3] sm:$0xff]
    %v101 = vld [vmem:[#allocation3 + $0x8] sm:$0xff]
    %v102 = vld [vmem:[#allocation3 + $0x10] sm:$0xff]
    %v103 = vld [vmem:[#allocation3 + $0x18] sm:$0xff]
    %v104 = vld [vmem:[#allocation3 + $0x20] sm:$0xff]
    %v105 = vld [vmem:[#allocation3 + $0x28] sm:$0xff]
    %v106 = vld [vmem:[#allocation3 + $0x30] sm:$0xff]
    %v107 = vld [vmem:[#allocation3 + $0x38] sm:$0xff]
    %v108 = vld [vmem:[#allocation6] sm:$0xff]
    %v109 = vld [vmem:[#allocation6 + $0x8] sm:$0xff]
    %v110 = vld [vmem:[#allocation6 + $0x10] sm:$0xff]
    %v111 = vld [vmem:[#allocation6 + $0x18] sm:$0xff]
    %v112 = vld [vmem:[%s5] sm:$0x3]
    %v114 = vlaneseq
    %v115 = vshrl.u32 %v114, 7
    %v116 = vsub.s32 0, %v115
    %v117 = vrot.slane %v112, %v116
    %v118 = vlaneseq
    %v119 = vshrl.u32 %v118, 7
    %v120 = vsub.s32 1, %v119
    %v121 = vrot.slane %v112, %v120
    %vm124 = vcmask 130048
    %v126 = vsel %vm124, %v100, 0
    %v129 = vsel %vm124, %v101, 0
    %v132 = vsel %vm124, %v102, 0
    %v135 = vsel %vm124, %v103, 0
    %v138 = vsel %vm124, %v104, 0
    %v141 = vsel %vm124, %v105, 0
    %v144 = vsel %vm124, %v106, 0
    %v147 = vsel %vm124, %v107, 0
    %149 = vmatprep.subr.mxu0 %v109
    %150 = vmatpush1.msra.mxu0 %v108
    %151 = vmatprep.subr.mxu0 %v111
    %152 = vmatpush1.msra.mxu0 %v110
    %153 = vmatprep.subr.mxu0 0.0
    %154 = vmatpush1.msra.mxu0 0.0
    %155 = vmatprep.subr.mxu0 0.0
    %156 = vmatpush1.msra.mxu0 0.0
    %157 = vmatprep.subr.mxu0 0.0
    %158 = vmatpush1.msra.mxu0 0.0
    %159 = vmatprep.subr.mxu0 0.0
    %160 = vmatpush1.msra.mxu0 0.0
    %161 = vmatprep.subr.mxu0 0.0
    %162 = vmatpush1.msra.mxu0 0.0
    %163 = vmatprep.subr.mxu0 0.0
    %164 = vmatpush1.msra.mxu0 0.0
    %165 = vmatprep.subr.mxu0 0.0
    %166 = vmatpush1.msra.mxu0 0.0
    %167 = vmatprep.subr.mxu0 0.0
    %168 = vmatpush1.msra.mxu0 0.0
    %169 = vmatprep.subr.mxu0 0.0
    %170 = vmatpush1.msra.mxu0 0.0
    %171 = vmatprep.subr.mxu0 0.0
    %172 = vmatpush1.msra.mxu0 0.0
    %173 = vmatprep.subr.mxu0 0.0
    %174 = vmatpush1.msra.mxu0 0.0
    %175 = vmatprep.subr.mxu0 0.0
    %176 = vmatpush1.msra.mxu0 0.0
    %177 = vmatprep.subr.mxu0 0.0
    %178 = vmatpush1.msra.mxu0 0.0
    %179 = vmatprep.subr.mxu0 0.0
    %180 = vmatpush1.msra.mxu0 0.0
    %181 = vmatprep.subr.mxu0 0.0
    %182 = vmatpush1.msra.mxu0 0.0
    %183 = vmatprep.subr.mxu0 0.0
    %184 = vmatpush1.msra.mxu0 0.0
    %185 = vmatprep.subr.mxu0 0.0
    %186 = vmatpush1.msra.mxu0 0.0
    %187 = vmatprep.subr.mxu0 0.0
    %188 = vmatpush1.msra.mxu0 0.0
    %189 = vmatprep.subr.mxu0 0.0
    %190 = vmatpush1.msra.mxu0 0.0
    %191 = vmatprep.subr.mxu0 0.0
    %192 = vmatpush1.msra.mxu0 0.0
    %193 = vmatprep.subr.mxu0 0.0
    %194 = vmatpush1.msra.mxu0 0.0
    %195 = vmatprep.subr.mxu0 0.0
    %196 = vmatpush1.msra.mxu0 0.0
    %197 = vmatprep.subr.mxu0 0.0
    %198 = vmatpush1.msra.mxu0 0.0
    %199 = vmatprep.subr.mxu0 0.0
    %200 = vmatpush1.msra.mxu0 0.0
    %201 = vmatprep.subr.mxu0 0.0
    %202 = vmatpush1.msra.mxu0 0.0
    %203 = vmatprep.subr.mxu0 0.0
    %204 = vmatpush1.msra.mxu0 0.0
    %205 = vmatprep.subr.mxu0 0.0
    %206 = vmatpush1.msra.mxu0 0.0
    %207 = vmatprep.subr.mxu0 0.0
    %208 = vmatpush1.msra.mxu0 0.0
    %209 = vmatprep.subr.mxu0 0.0
    %210 = vmatpush1.msra.mxu0 0.0
    %211 = vmatprep.subr.mxu0 0.0
    %212 = vmatpush1.msra.mxu0 0.0
    %213 = vmatprep.mubr.f32.mxu0 0.0
    %214 = vmatmul.mubr.f32.gmra.mrb[0].mxu0 %v126
    %v215 = vpop.f32.mrb[0].mxu0
    %v216 = vadd.f32 %v117, %v215
    %v217 = vpop.f32.mrb[0].mxu0
    %v218 = vadd.f32 %v121, %v217
    %219 = vmatprep.mubr.f32.mxu0 0.0
    %220 = vmatmul.mubr.f32.gmra.mrb[0].mxu0 %v129
    %v221 = vpop.f32.mrb[0].mxu0
    %v222 = vadd.f32 %v117, %v221
    %v223 = vpop.f32.mrb[0].mxu0
    %v224 = vadd.f32 %v121, %v223
    %225 = vmatprep.mubr.f32.mxu0 0.0
    %226 = vmatmul.mubr.f32.gmra.mrb[0].mxu0 %v132
    %v227 = vpop.f32.mrb[0].mxu0
    %v228 = vadd.f32 %v117, %v227
    %v229 = vpop.f32.mrb[0].mxu0
    %v230 = vadd.f32 %v121, %v229
    %231 = vmatprep.mubr.f32.mxu0 0.0
    %232 = vmatmul.mubr.f32.gmra.mrb[0].mxu0 %v135
    %v233 = vpop.f32.mrb[0].mxu0
    %v234 = vadd.f32 %v117, %v233
    %v235 = vpop.f32.mrb[0].mxu0
    %v236 = vadd.f32 %v121, %v235
    %237 = vmatprep.mubr.f32.mxu0 0.0
    %238 = vmatmul.mubr.f32.gmra.mrb[0].mxu0 %v138
    %v239 = vpop.f32.mrb[0].mxu0
    %v240 = vadd.f32 %v117, %v239
    %v241 = vpop.f32.mrb[0].mxu0
    %v242 = vadd.f32 %v121, %v241
    %243 = vmatprep.mubr.f32.mxu0 0.0
    %244 = vmatmul.mubr.f32.gmra.mrb[0].mxu0 %v141
    %v245 = vpop.f32.mrb[0].mxu0
    %v246 = vadd.f32 %v117, %v245
    %v247 = vpop.f32.mrb[0].mxu0
    %v248 = vadd.f32 %v121, %v247
    %249 = vmatprep.mubr.f32.mxu0 0.0
    %250 = vmatmul.mubr.f32.gmra.mrb[0].mxu0 %v144
    %v251 = vpop.f32.mrb[0].mxu0
    %v252 = vadd.f32 %v117, %v251
    %v253 = vpop.f32.mrb[0].mxu0
    %v254 = vadd.f32 %v121, %v253
    %255 = vmatprep.mubr.f32.mxu0 0.0
    %256 = vmatmul.mubr.f32.gmra.mrb[0].mxu0 %v147
    %v257 = vpop.f32.mrb[0].mxu0
    %v258 = vadd.f32 %v117, %v257
    %v259 = vpop.f32.mrb[0].mxu0
    %v260 = vadd.f32 %v121, %v259
    %261 = vdwg.mxu0
    %262 = vst [vmem:[#allocation2] sm:$0xff] %v216
    %263 = vst [vmem:[#allocation2 + $0x8] sm:$0xff] %v218
    %264 = vst [vmem:[#allocation2 + $0x10] sm:$0xff] %v222
    %265 = vst [vmem:[#allocation2 + $0x18] sm:$0xff] %v224
    %266 = vst [vmem:[#allocation2 + $0x20] sm:$0xff] %v228
    %267 = vst [vmem:[#allocation2 + $0x28] sm:$0xff] %v230
    %268 = vst [vmem:[#allocation2 + $0x30] sm:$0xff] %v234
    %269 = vst [vmem:[#allocation2 + $0x38] sm:$0xff] %v236
    %270 = vst [vmem:[#allocation2 + $0x40] sm:$0xff] %v240
    %271 = vst [vmem:[#allocation2 + $0x48] sm:$0xff] %v242
    %272 = vst [vmem:[#allocation2 + $0x50] sm:$0xff] %v246
    %273 = vst [vmem:[#allocation2 + $0x58] sm:$0xff] %v248
    %274 = vst [vmem:[#allocation2 + $0x60] sm:$0xff] %v252
    %275 = vst [vmem:[#allocation2 + $0x68] sm:$0xff] %v254
    %276 = vst [vmem:[#allocation2 + $0x70] sm:$0xff] %v258
    %277 = vst [vmem:[#allocation2 + $0x78] sm:$0xff] %v260
    %v278 = vld [vmem:[%s2] sm:$0xff]
    %v279 = vld [vmem:[%s3] sm:$0xff]
    %v280 = vld [vmem:[#allocation2] sm:$0xff]
    %v281 = vld [vmem:[#allocation2 + $0x8] sm:$0xff]
    %vm282 = vcmask 523264
    %v284 = vsel %vm282, %v278, 0
    %286 = vmatprep.subr.mxu0 %v69
    %287 = vmatpush1.msra.mxu0 %v68
    %288 = vmatprep.subr.mxu0 %v71
    %289 = vmatpush1.msra.mxu0 %v70
    %290 = vmatprep.subr.mxu0 %v73
    %291 = vmatpush1.msra.mxu0 %v72
    %292 = vmatprep.subr.mxu0 %v75
    %293 = vmatpush1.msra.mxu0 %v74
    %294 = vmatprep.subr.mxu0 %v77
    %295 = vmatpush1.msra.mxu0 %v76
    %296 = vmatprep.subr.mxu0 %v79
    %297 = vmatpush1.msra.mxu0 %v78
    %298 = vmatprep.subr.mxu0 %v81
    %299 = vmatpush1.msra.mxu0 %v80
    %300 = vmatprep.subr.mxu0 %v83
    %301 = vmatpush1.msra.mxu0 %v82
    %302 = vmatprep.subr.mxu0 0.0
    %303 = vmatpush1.msra.mxu0 0.0
    %304 = vmatprep.subr.mxu0 0.0
    %305 = vmatpush1.msra.mxu0 0.0
    %306 = vmatprep.subr.mxu0 0.0
    %307 = vmatpush1.msra.mxu0 0.0
    %308 = vmatprep.subr.mxu0 0.0
    %309 = vmatpush1.msra.mxu0 0.0
    %310 = vmatprep.subr.mxu0 0.0
    %311 = vmatpush1.msra.mxu0 0.0
    %312 = vmatprep.subr.mxu0 0.0
    %313 = vmatpush1.msra.mxu0 0.0
    %314 = vmatprep.subr.mxu0 0.0
    %315 = vmatpush1.msra.mxu0 0.0
    %316 = vmatprep.subr.mxu0 0.0
    %317 = vmatpush1.msra.mxu0 0.0
    %318 = vmatprep.subr.mxu0 0.0
    %319 = vmatpush1.msra.mxu0 0.0
    %320 = vmatprep.subr.mxu0 0.0
    %321 = vmatpush1.msra.mxu0 0.0
    %322 = vmatprep.subr.mxu0 0.0
    %323 = vmatpush1.msra.mxu0 0.0
    %324 = vmatprep.subr.mxu0 0.0
    %325 = vmatpush1.msra.mxu0 0.0
    %326 = vmatprep.subr.mxu0 0.0
    %327 = vmatpush1.msra.mxu0 0.0
    %328 = vmatprep.subr.mxu0 0.0
    %329 = vmatpush1.msra.mxu0 0.0
    %330 = vmatprep.subr.mxu0 0.0
    %331 = vmatpush1.msra.mxu0 0.0
    %332 = vmatprep.subr.mxu0 0.0
    %333 = vmatpush1.msra.mxu0 0.0
    %334 = vmatprep.subr.mxu0 0.0
    %335 = vmatpush1.msra.mxu0 0.0
    %336 = vmatprep.subr.mxu0 0.0
    %337 = vmatpush1.msra.mxu0 0.0
    %338 = vmatprep.subr.mxu0 0.0
    %339 = vmatpush1.msra.mxu0 0.0
    %340 = vmatprep.subr.mxu0 0.0
    %341 = vmatpush1.msra.mxu0 0.0
    %342 = vmatprep.subr.mxu0 0.0
    %343 = vmatpush1.msra.mxu0 0.0
    %344 = vmatprep.subr.mxu0 0.0
    %345 = vmatpush1.msra.mxu0 0.0
    %346 = vmatprep.subr.mxu0 0.0
    %347 = vmatpush1.msra.mxu0 0.0
    %348 = vmatprep.subr.mxu0 0.0
    %349 = vmatpush1.msra.mxu0 0.0
    %350 = vmatprep.mubr.f32.mxu0 0.0
    %351 = vmatmul.mubr.f32.gmra.mrb[0].mxu0 %v284
    %v352 = vpop.f32.mrb[0].mxu0
    %v353 = vadd.f32 0.0, %v352
    %v354 = vpop.f32.mrb[0].mxu0
    %v355 = vadd.f32 0.0, %v354
    %356 = vdwg.mxu0
    %v357 = vadd.f32 %v280, %v353
    %v358 = vadd.f32 %v281, %v355
    %v359 = vmul.f32 %v357, %v94
    %v360 = vmul.f32 %v358, %v95
    %v361 = vtanh.pop %v359
    %v362 = vtanh.pop %v360
    %v363 = vmul.f32 %v361, %v94
    %v364 = vmul.f32 %v362, %v95
    %v365 = vadd.f32 %v363, %v96
    %v366 = vadd.f32 %v364, %v97
    %368 = vrot.lane.b32.xlu0 %v279, 64
    %v369 = vpop.permute.xlu0 %368
    %v371 = vmul.f32 %v365, %v369
    %v372 = vmul.f32 %v365, %v366
    %374 = vrot.lane.b32.xlu0 %v372, 64
    %v375 = vpop.permute.xlu0 %374
    %v377 = vadd.f32 %v371, %v375
    %v378 = vtanh.pop %v377
    %v379 = vmul.f32 %v366, %v378
    %v380 = vsub.s32 0, %v99
    %vm381 = vcmp.ge.s32.totalorder %v380, 0
    %382 = vset.pattern.permute.xlu0 0
    %383 = vperm.xlu0 %382, %v84
    %v384 = vpop.permute.xlu0 %383
    %vm385 = vcmp.lt.s32.totalorder %v380, %v384
    %v386 = vsel %vm381, 1, 0
    %vm387 = vcmp.eq.s32.totalorder %v386, 1
    %vm388 = vmand %vm387, %vm385
    %390 = vrot.lane.b32.xlu0 %v379, 64
    %v391 = vpop.permute.xlu0 %390
    %v393 = vsel %vm388, %v391, %v278
    %395 = vrot.lane.b32.xlu0 %v377, 64
    %v396 = vpop.permute.xlu0 %395
    %v398 = vsel %vm388, %v396, %v279
    %s399 = scalar_lea.vmem [#allocation2], 16
    %v400 = vld [vmem:[%s399] sm:$0xff]
    %v401 = vld [vmem:[%s399 + $0x8] sm:$0xff]
    %v403 = vsel %vm282, %v393, 0
    %405 = vmatprep.subr.mxu0 %v69
    %406 = vmatpush1.msra.mxu0 %v68
    %407 = vmatprep.subr.mxu0 %v71
    %408 = vmatpush1.msra.mxu0 %v70
    %409 = vmatprep.subr.mxu0 %v73
    %410 = vmatpush1.msra.mxu0 %v72
    %411 = vmatprep.subr.mxu0 %v75
    %412 = vmatpush1.msra.mxu0 %v74
    %413 = vmatprep.subr.mxu0 %v77
    %414 = vmatpush1.msra.mxu0 %v76
    %415 = vmatprep.subr.mxu0 %v79
    %416 = vmatpush1.msra.mxu0 %v78
    %417 = vmatprep.subr.mxu0 %v81
    %418 = vmatpush1.msra.mxu0 %v80
    %419 = vmatprep.subr.mxu0 %v83
    %420 = vmatpush1.msra.mxu0 %v82
    %421 = vmatprep.subr.mxu0 0.0
    %422 = vmatpush1.msra.mxu0 0.0
    %423 = vmatprep.subr.mxu0 0.0
    %424 = vmatpush1.msra.mxu0 0.0
    %425 = vmatprep.subr.mxu0 0.0
    %426 = vmatpush1.msra.mxu0 0.0
    %427 = vmatprep.subr.mxu0 0.0
    %428 = vmatpush1.msra.mxu0 0.0
    %429 = vmatprep.subr.mxu0 0.0
    %430 = vmatpush1.msra.mxu0 0.0
    %431 = vmatprep.subr.mxu0 0.0
    %432 = vmatpush1.msra.mxu0 0.0
    %433 = vmatprep.subr.mxu0 0.0
    %434 = vmatpush1.msra.mxu0 0.0
    %435 = vmatprep.subr.mxu0 0.0
    %436 = vmatpush1.msra.mxu0 0.0
    %437 = vmatprep.subr.mxu0 0.0
    %438 = vmatpush1.msra.mxu0 0.0
    %439 = vmatprep.subr.mxu0 0.0
    %440 = vmatpush1.msra.mxu0 0.0
    %441 = vmatprep.subr.mxu0 0.0
    %442 = vmatpush1.msra.mxu0 0.0
    %443 = vmatprep.subr.mxu0 0.0
    %444 = vmatpush1.msra.mxu0 0.0
    %445 = vmatprep.subr.mxu0 0.0
    %446 = vmatpush1.msra.mxu0 0.0
    %447 = vmatprep.subr.mxu0 0.0
    %448 = vmatpush1.msra.mxu0 0.0
    %449 = vmatprep.subr.mxu0 0.0
    %450 = vmatpush1.msra.mxu0 0.0
    %451 = vmatprep.subr.mxu0 0.0
    %452 = vmatpush1.msra.mxu0 0.0
    %453 = vmatprep.subr.mxu0 0.0
    %454 = vmatpush1.msra.mxu0 0.0
    %455 = vmatprep.subr.mxu0 0.0
    %456 = vmatpush1.msra.mxu0 0.0
    %457 = vmatprep.subr.mxu0 0.0
    %458 = vmatpush1.msra.mxu0 0.0
    %459 = vmatprep.subr.mxu0 0.0
    %460 = vmatpush1.msra.mxu0 0.0
    %461 = vmatprep.subr.mxu0 0.0
    %462 = vmatpush1.msra.mxu0 0.0
    %463 = vmatprep.subr.mxu0 0.0
    %464 = vmatpush1.msra.mxu0 0.0
    %465 = vmatprep.subr.mxu0 0.0
    %466 = vmatpush1.msra.mxu0 0.0
    %467 = vmatprep.subr.mxu0 0.0
    %468 = vmatpush1.msra.mxu0 0.0
    %469 = vmatprep.mubr.f32.mxu0 0.0
    %470 = vmatmul.mubr.f32.gmra.mrb[0].mxu0 %v403
    %v471 = vpop.f32.mrb[0].mxu0
    %v472 = vadd.f32 0.0, %v471
    %v473 = vpop.f32.mrb[0].mxu0
    %v474 = vadd.f32 0.0, %v473
    %475 = vdwg.mxu0
    %v476 = vadd.f32 %v400, %v472
    %v477 = vadd.f32 %v401, %v474
    %v478 = vmul.f32 %v476, %v94
    %v479 = vmul.f32 %v477, %v95
    %v480 = vtanh.pop %v478
    %v481 = vtanh.pop %v479
    %v482 = vmul.f32 %v480, %v94
    %v483 = vmul.f32 %v481, %v95
    %v484 = vadd.f32 %v482, %v96
    %v485 = vadd.f32 %v483, %v97
    %487 = vrot.lane.b32.xlu0 %v398, 64
    %v488 = vpop.permute.xlu0 %487
    %v490 = vmul.f32 %v484, %v488
    %v491 = vmul.f32 %v484, %v485
    %493 = vrot.lane.b32.xlu0 %v491, 64
    %v494 = vpop.permute.xlu0 %493
    %v496 = vadd.f32 %v490, %v494
    %v497 = vtanh.pop %v496
    %v498 = vmul.f32 %v485, %v497
    %v499 = vsub.s32 1, %v99
    %vm500 = vcmp.ge.s32.totalorder %v499, 0
    %vm501 = vcmp.lt.s32.totalorder %v499, %v384
    %v502 = vsel %vm500, 1, 0
    %vm503 = vcmp.eq.s32.totalorder %v502, 1
    %vm504 = vmand %vm503, %vm501
    %506 = vrot.lane.b32.xlu0 %v498, 64
    %v507 = vpop.permute.xlu0 %506
    %v509 = vsel %vm504, %v507, %v393
    %511 = vrot.lane.b32.xlu0 %v496, 64
    %v512 = vpop.permute.xlu0 %511
    %v514 = vsel %vm504, %v512, %v398
    %s515 = scalar_lea.vmem [#allocation2], 32
    %v516 = vld [vmem:[%s515] sm:$0xff]
    %v517 = vld [vmem:[%s515 + $0x8] sm:$0xff]
    %v519 = vsel %vm282, %v509, 0
    %521 = vmatprep.subr.mxu0 %v69
    %522 = vmatpush1.msra.mxu0 %v68
    %523 = vmatprep.subr.mxu0 %v71
    %524 = vmatpush1.msra.mxu0 %v70
    %525 = vmatprep.subr.mxu0 %v73
    %526 = vmatpush1.msra.mxu0 %v72
    %527 = vmatprep.subr.mxu0 %v75
    %528 = vmatpush1.msra.mxu0 %v74
    %529 = vmatprep.subr.mxu0 %v77
    %530 = vmatpush1.msra.mxu0 %v76
    %531 = vmatprep.subr.mxu0 %v79
    %532 = vmatpush1.msra.mxu0 %v78
    %533 = vmatprep.subr.mxu0 %v81
    %534 = vmatpush1.msra.mxu0 %v80
    %535 = vmatprep.subr.mxu0 %v83
    %536 = vmatpush1.msra.mxu0 %v82
    %537 = vmatprep.subr.mxu0 0.0
    %538 = vmatpush1.msra.mxu0 0.0
    %539 = vmatprep.subr.mxu0 0.0
    %540 = vmatpush1.msra.mxu0 0.0
    %541 = vmatprep.subr.mxu0 0.0
    %542 = vmatpush1.msra.mxu0 0.0
    %543 = vmatprep.subr.mxu0 0.0
    %544 = vmatpush1.msra.mxu0 0.0
    %545 = vmatprep.subr.mxu0 0.0
    %546 = vmatpush1.msra.mxu0 0.0
    %547 = vmatprep.subr.mxu0 0.0
    %548 = vmatpush1.msra.mxu0 0.0
    %549 = vmatprep.subr.mxu0 0.0
    %550 = vmatpush1.msra.mxu0 0.0
    %551 = vmatprep.subr.mxu0 0.0
    %552 = vmatpush1.msra.mxu0 0.0
    %553 = vmatprep.subr.mxu0 0.0
    %554 = vmatpush1.msra.mxu0 0.0
    %555 = vmatprep.subr.mxu0 0.0
    %556 = vmatpush1.msra.mxu0 0.0
    %557 = vmatprep.subr.mxu0 0.0
    %558 = vmatpush1.msra.mxu0 0.0
    %559 = vmatprep.subr.mxu0 0.0
    %560 = vmatpush1.msra.mxu0 0.0
    %561 = vmatprep.subr.mxu0 0.0
    %562 = vmatpush1.msra.mxu0 0.0
    %563 = vmatprep.subr.mxu0 0.0
    %564 = vmatpush1.msra.mxu0 0.0
    %565 = vmatprep.subr.mxu0 0.0
    %566 = vmatpush1.msra.mxu0 0.0
    %567 = vmatprep.subr.mxu0 0.0
    %568 = vmatpush1.msra.mxu0 0.0
    %569 = vmatprep.subr.mxu0 0.0
    %570 = vmatpush1.msra.mxu0 0.0
    %571 = vmatprep.subr.mxu0 0.0
    %572 = vmatpush1.msra.mxu0 0.0
    %573 = vmatprep.subr.mxu0 0.0
    %574 = vmatpush1.msra.mxu0 0.0
    %575 = vmatprep.subr.mxu0 0.0
    %576 = vmatpush1.msra.mxu0 0.0
    %577 = vmatprep.subr.mxu0 0.0
    %578 = vmatpush1.msra.mxu0 0.0
    %579 = vmatprep.subr.mxu0 0.0
    %580 = vmatpush1.msra.mxu0 0.0
    %581 = vmatprep.subr.mxu0 0.0
    %582 = vmatpush1.msra.mxu0 0.0
    %583 = vmatprep.subr.mxu0 0.0
    %584 = vmatpush1.msra.mxu0 0.0
    %585 = vmatprep.mubr.f32.mxu0 0.0
    %586 = vmatmul.mubr.f32.gmra.mrb[0].mxu0 %v519
    %v587 = vpop.f32.mrb[0].mxu0
    %v588 = vadd.f32 0.0, %v587
    %v589 = vpop.f32.mrb[0].mxu0
    %v590 = vadd.f32 0.0, %v589
    %591 = vdwg.mxu0
    %v592 = vadd.f32 %v516, %v588
    %v593 = vadd.f32 %v517, %v590
    %v594 = vmul.f32 %v592, %v94
    %v595 = vmul.f32 %v593, %v95
    %v596 = vtanh.pop %v594
    %v597 = vtanh.pop %v595
    %v598 = vmul.f32 %v596, %v94
    %v599 = vmul.f32 %v597, %v95
    %v600 = vadd.f32 %v598, %v96
    %v601 = vadd.f32 %v599, %v97
    %603 = vrot.lane.b32.xlu0 %v514, 64
    %v604 = vpop.permute.xlu0 %603
    %v606 = vmul.f32 %v600, %v604
    %v607 = vmul.f32 %v600, %v601
    %609 = vrot.lane.b32.xlu0 %v607, 64
    %v610 = vpop.permute.xlu0 %609
    %v612 = vadd.f32 %v606, %v610
    %v613 = vtanh.pop %v612
    %v614 = vmul.f32 %v601, %v613
    %v615 = vsub.s32 2, %v99
    %vm616 = vcmp.ge.s32.totalorder %v615, 0
    %vm617 = vcmp.lt.s32.totalorder %v615, %v384
    %v618 = vsel %vm616, 1, 0
    %vm619 = vcmp.eq.s32.totalorder %v618, 1
    %vm620 = vmand %vm619, %vm617
    %622 = vrot.lane.b32.xlu0 %v614, 64
    %v623 = vpop.permute.xlu0 %622
    %v625 = vsel %vm620, %v623, %v509
    %627 = vrot.lane.b32.xlu0 %v612, 64
    %v628 = vpop.permute.xlu0 %627
    %v630 = vsel %vm620, %v628, %v514
    %s631 = scalar_lea.vmem [#allocation2], 48
    %v632 = vld [vmem:[%s631] sm:$0xff]
    %v633 = vld [vmem:[%s631 + $0x8] sm:$0xff]
    %v635 = vsel %vm282, %v625, 0
    %637 = vmatprep.subr.mxu0 %v69
    %638 = vmatpush1.msra.mxu0 %v68
    %639 = vmatprep.subr.mxu0 %v71
    %640 = vmatpush1.msra.mxu0 %v70
    %641 = vmatprep.subr.mxu0 %v73
    %642 = vmatpush1.msra.mxu0 %v72
    %643 = vmatprep.subr.mxu0 %v75
    %644 = vmatpush1.msra.mxu0 %v74
    %645 = vmatprep.subr.mxu0 %v77
    %646 = vmatpush1.msra.mxu0 %v76
    %647 = vmatprep.subr.mxu0 %v79
    %648 = vmatpush1.msra.mxu0 %v78
    %649 = vmatprep.subr.mxu0 %v81
    %650 = vmatpush1.msra.mxu0 %v80
    %651 = vmatprep.subr.mxu0 %v83
    %652 = vmatpush1.msra.mxu0 %v82
    %653 = vmatprep.subr.mxu0 0.0
    %654 = vmatpush1.msra.mxu0 0.0
    %655 = vmatprep.subr.mxu0 0.0
    %656 = vmatpush1.msra.mxu0 0.0
    %657 = vmatprep.subr.mxu0 0.0
    %658 = vmatpush1.msra.mxu0 0.0
    %659 = vmatprep.subr.mxu0 0.0
    %660 = vmatpush1.msra.mxu0 0.0
    %661 = vmatprep.subr.mxu0 0.0
    %662 = vmatpush1.msra.mxu0 0.0
    %663 = vmatprep.subr.mxu0 0.0
    %664 = vmatpush1.msra.mxu0 0.0
    %665 = vmatprep.subr.mxu0 0.0
    %666 = vmatpush1.msra.mxu0 0.0
    %667 = vmatprep.subr.mxu0 0.0
    %668 = vmatpush1.msra.mxu0 0.0
    %669 = vmatprep.subr.mxu0 0.0
    %670 = vmatpush1.msra.mxu0 0.0
    %671 = vmatprep.subr.mxu0 0.0
    %672 = vmatpush1.msra.mxu0 0.0
    %673 = vmatprep.subr.mxu0 0.0
    %674 = vmatpush1.msra.mxu0 0.0
    %675 = vmatprep.subr.mxu0 0.0
    %676 = vmatpush1.msra.mxu0 0.0
    %677 = vmatprep.subr.mxu0 0.0
    %678 = vmatpush1.msra.mxu0 0.0
    %679 = vmatprep.subr.mxu0 0.0
    %680 = vmatpush1.msra.mxu0 0.0
    %681 = vmatprep.subr.mxu0 0.0
    %682 = vmatpush1.msra.mxu0 0.0
    %683 = vmatprep.subr.mxu0 0.0
    %684 = vmatpush1.msra.mxu0 0.0
    %685 = vmatprep.subr.mxu0 0.0
    %686 = vmatpush1.msra.mxu0 0.0
    %687 = vmatprep.subr.mxu0 0.0
    %688 = vmatpush1.msra.mxu0 0.0
    %689 = vmatprep.subr.mxu0 0.0
    %690 = vmatpush1.msra.mxu0 0.0
    %691 = vmatprep.subr.mxu0 0.0
    %692 = vmatpush1.msra.mxu0 0.0
    %693 = vmatprep.subr.mxu0 0.0
    %694 = vmatpush1.msra.mxu0 0.0
    %695 = vmatprep.subr.mxu0 0.0
    %696 = vmatpush1.msra.mxu0 0.0
    %697 = vmatprep.subr.mxu0 0.0
    %698 = vmatpush1.msra.mxu0 0.0
    %699 = vmatprep.subr.mxu0 0.0
    %700 = vmatpush1.msra.mxu0 0.0
    %701 = vmatprep.mubr.f32.mxu0 0.0
    %702 = vmatmul.mubr.f32.gmra.mrb[0].mxu0 %v635
    %v703 = vpop.f32.mrb[0].mxu0
    %v704 = vadd.f32 0.0, %v703
    %v705 = vpop.f32.mrb[0].mxu0
    %v706 = vadd.f32 0.0, %v705
    %707 = vdwg.mxu0
    %v708 = vadd.f32 %v632, %v704
    %v709 = vadd.f32 %v633, %v706
    %v710 = vmul.f32 %v708, %v94
    %v711 = vmul.f32 %v709, %v95
    %v712 = vtanh.pop %v710
    %v713 = vtanh.pop %v711
    %v714 = vmul.f32 %v712, %v94
    %v715 = vmul.f32 %v713, %v95
    %v716 = vadd.f32 %v714, %v96
    %v717 = vadd.f32 %v715, %v97
    %719 = vrot.lane.b32.xlu0 %v630, 64
    %v720 = vpop.permute.xlu0 %719
    %v722 = vmul.f32 %v716, %v720
    %v723 = vmul.f32 %v716, %v717
    %725 = vrot.lane.b32.xlu0 %v723, 64
    %v726 = vpop.permute.xlu0 %725
    %v728 = vadd.f32 %v722, %v726
    %v729 = vtanh.pop %v728
    %v730 = vmul.f32 %v717, %v729
    %v731 = vsub.s32 3, %v99
    %vm732 = vcmp.ge.s32.totalorder %v731, 0
    %vm733 = vcmp.lt.s32.totalorder %v731, %v384
    %v734 = vsel %vm732, 1, 0
    %vm735 = vcmp.eq.s32.totalorder %v734, 1
    %vm736 = vmand %vm735, %vm733
    %738 = vrot.lane.b32.xlu0 %v730, 64
    %v739 = vpop.permute.xlu0 %738
    %v741 = vsel %vm736, %v739, %v625
    %743 = vrot.lane.b32.xlu0 %v728, 64
    %v744 = vpop.permute.xlu0 %743
    %v746 = vsel %vm736, %v744, %v630
    %s747 = scalar_lea.vmem [#allocation2], 64
    %v748 = vld [vmem:[%s747] sm:$0xff]
    %v749 = vld [vmem:[%s747 + $0x8] sm:$0xff]
    %v751 = vsel %vm282, %v741, 0
    %753 = vmatprep.subr.mxu0 %v69
    %754 = vmatpush1.msra.mxu0 %v68
    %755 = vmatprep.subr.mxu0 %v71
    %756 = vmatpush1.msra.mxu0 %v70
    %757 = vmatprep.subr.mxu0 %v73
    %758 = vmatpush1.msra.mxu0 %v72
    %759 = vmatprep.subr.mxu0 %v75
    %760 = vmatpush1.msra.mxu0 %v74
    %761 = vmatprep.subr.mxu0 %v77
    %762 = vmatpush1.msra.mxu0 %v76
    %763 = vmatprep.subr.mxu0 %v79
    %764 = vmatpush1.msra.mxu0 %v78
    %765 = vmatprep.subr.mxu0 %v81
    %766 = vmatpush1.msra.mxu0 %v80
    %767 = vmatprep.subr.mxu0 %v83
    %768 = vmatpush1.msra.mxu0 %v82
    %769 = vmatprep.subr.mxu0 0.0
    %770 = vmatpush1.msra.mxu0 0.0
    %771 = vmatprep.subr.mxu0 0.0
    %772 = vmatpush1.msra.mxu0 0.0
    %773 = vmatprep.subr.mxu0 0.0
    %774 = vmatpush1.msra.mxu0 0.0
    %775 = vmatprep.subr.mxu0 0.0
    %776 = vmatpush1.msra.mxu0 0.0
    %777 = vmatprep.subr.mxu0 0.0
    %778 = vmatpush1.msra.mxu0 0.0
    %779 = vmatprep.subr.mxu0 0.0
    %780 = vmatpush1.msra.mxu0 0.0
    %781 = vmatprep.subr.mxu0 0.0
    %782 = vmatpush1.msra.mxu0 0.0
    %783 = vmatprep.subr.mxu0 0.0
    %784 = vmatpush1.msra.mxu0 0.0
    %785 = vmatprep.subr.mxu0 0.0
    %786 = vmatpush1.msra.mxu0 0.0
    %787 = vmatprep.subr.mxu0 0.0
    %788 = vmatpush1.msra.mxu0 0.0
    %789 = vmatprep.subr.mxu0 0.0
    %790 = vmatpush1.msra.mxu0 0.0
    %791 = vmatprep.subr.mxu0 0.0
    %792 = vmatpush1.msra.mxu0 0.0
    %793 = vmatprep.subr.mxu0 0.0
    %794 = vmatpush1.msra.mxu0 0.0
    %795 = vmatprep.subr.mxu0 0.0
    %796 = vmatpush1.msra.mxu0 0.0
    %797 = vmatprep.subr.mxu0 0.0
    %798 = vmatpush1.msra.mxu0 0.0
    %799 = vmatprep.subr.mxu0 0.0
    %800 = vmatpush1.msra.mxu0 0.0
    %801 = vmatprep.subr.mxu0 0.0
    %802 = vmatpush1.msra.mxu0 0.0
    %803 = vmatprep.subr.mxu0 0.0
    %804 = vmatpush1.msra.mxu0 0.0
    %805 = vmatprep.subr.mxu0 0.0
    %806 = vmatpush1.msra.mxu0 0.0
    %807 = vmatprep.subr.mxu0 0.0
    %808 = vmatpush1.msra.mxu0 0.0
    %809 = vmatprep.subr.mxu0 0.0
    %810 = vmatpush1.msra.mxu0 0.0
    %811 = vmatprep.subr.mxu0 0.0
    %812 = vmatpush1.msra.mxu0 0.0
    %813 = vmatprep.subr.mxu0 0.0
    %814 = vmatpush1.msra.mxu0 0.0
    %815 = vmatprep.subr.mxu0 0.0
    %816 = vmatpush1.msra.mxu0 0.0
    %817 = vmatprep.mubr.f32.mxu0 0.0
    %818 = vmatmul.mubr.f32.gmra.mrb[0].mxu0 %v751
    %v819 = vpop.f32.mrb[0].mxu0
    %v820 = vadd.f32 0.0, %v819
    %v821 = vpop.f32.mrb[0].mxu0
    %v822 = vadd.f32 0.0, %v821
    %823 = vdwg.mxu0
    %v824 = vadd.f32 %v748, %v820
    %v825 = vadd.f32 %v749, %v822
    %v826 = vmul.f32 %v824, %v94
    %v827 = vmul.f32 %v825, %v95
    %v828 = vtanh.pop %v826
    %v829 = vtanh.pop %v827
    %v830 = vmul.f32 %v828, %v94
    %v831 = vmul.f32 %v829, %v95
    %v832 = vadd.f32 %v830, %v96
    %v833 = vadd.f32 %v831, %v97
    %835 = vrot.lane.b32.xlu0 %v746, 64
    %v836 = vpop.permute.xlu0 %835
    %v838 = vmul.f32 %v832, %v836
    %v839 = vmul.f32 %v832, %v833
    %841 = vrot.lane.b32.xlu0 %v839, 64
    %v842 = vpop.permute.xlu0 %841
    %v844 = vadd.f32 %v838, %v842
    %v845 = vtanh.pop %v844
    %v846 = vmul.f32 %v833, %v845
    %v847 = vsub.s32 4, %v99
    %vm848 = vcmp.ge.s32.totalorder %v847, 0
    %vm849 = vcmp.lt.s32.totalorder %v847, %v384
    %v850 = vsel %vm848, 1, 0
    %vm851 = vcmp.eq.s32.totalorder %v850, 1
    %vm852 = vmand %vm851, %vm849
    %854 = vrot.lane.b32.xlu0 %v846, 64
    %v855 = vpop.permute.xlu0 %854
    %v857 = vsel %vm852, %v855, %v741
    %859 = vrot.lane.b32.xlu0 %v844, 64
    %v860 = vpop.permute.xlu0 %859
    %v862 = vsel %vm852, %v860, %v746
    %s863 = scalar_lea.vmem [#allocation2], 80
    %v864 = vld [vmem:[%s863] sm:$0xff]
    %v865 = vld [vmem:[%s863 + $0x8] sm:$0xff]
    %v867 = vsel %vm282, %v857, 0
    %869 = vmatprep.subr.mxu0 %v69
    %870 = vmatpush1.msra.mxu0 %v68
    %871 = vmatprep.subr.mxu0 %v71
    %872 = vmatpush1.msra.mxu0 %v70
    %873 = vmatprep.subr.mxu0 %v73
    %874 = vmatpush1.msra.mxu0 %v72
    %875 = vmatprep.subr.mxu0 %v75
    %876 = vmatpush1.msra.mxu0 %v74
    %877 = vmatprep.subr.mxu0 %v77
    %878 = vmatpush1.msra.mxu0 %v76
    %879 = vmatprep.subr.mxu0 %v79
    %880 = vmatpush1.msra.mxu0 %v78
    %881 = vmatprep.subr.mxu0 %v81
    %882 = vmatpush1.msra.mxu0 %v80
    %883 = vmatprep.subr.mxu0 %v83
    %884 = vmatpush1.msra.mxu0 %v82
    %885 = vmatprep.subr.mxu0 0.0
    %886 = vmatpush1.msra.mxu0 0.0
    %887 = vmatprep.subr.mxu0 0.0
    %888 = vmatpush1.msra.mxu0 0.0
    %889 = vmatprep.subr.mxu0 0.0
    %890 = vmatpush1.msra.mxu0 0.0
    %891 = vmatprep.subr.mxu0 0.0
    %892 = vmatpush1.msra.mxu0 0.0
    %893 = vmatprep.subr.mxu0 0.0
    %894 = vmatpush1.msra.mxu0 0.0
    %895 = vmatprep.subr.mxu0 0.0
    %896 = vmatpush1.msra.mxu0 0.0
    %897 = vmatprep.subr.mxu0 0.0
    %898 = vmatpush1.msra.mxu0 0.0
    %899 = vmatprep.subr.mxu0 0.0
    %900 = vmatpush1.msra.mxu0 0.0
    %901 = vmatprep.subr.mxu0 0.0
    %902 = vmatpush1.msra.mxu0 0.0
    %903 = vmatprep.subr.mxu0 0.0
    %904 = vmatpush1.msra.mxu0 0.0
    %905 = vmatprep.subr.mxu0 0.0
    %906 = vmatpush1.msra.mxu0 0.0
    %907 = vmatprep.subr.mxu0 0.0
    %908 = vmatpush1.msra.mxu0 0.0
    %909 = vmatprep.subr.mxu0 0.0
    %910 = vmatpush1.msra.mxu0 0.0
    %911 = vmatprep.subr.mxu0 0.0
    %912 = vmatpush1.msra.mxu0 0.0
    %913 = vmatprep.subr.mxu0 0.0
    %914 = vmatpush1.msra.mxu0 0.0
    %915 = vmatprep.subr.mxu0 0.0
    %916 = vmatpush1.msra.mxu0 0.0
    %917 = vmatprep.subr.mxu0 0.0
    %918 = vmatpush1.msra.mxu0 0.0
    %919 = vmatprep.subr.mxu0 0.0
    %920 = vmatpush1.msra.mxu0 0.0
    %921 = vmatprep.subr.mxu0 0.0
    %922 = vmatpush1.msra.mxu0 0.0
    %923 = vmatprep.subr.mxu0 0.0
    %924 = vmatpush1.msra.mxu0 0.0
    %925 = vmatprep.subr.mxu0 0.0
    %926 = vmatpush1.msra.mxu0 0.0
    %927 = vmatprep.subr.mxu0 0.0
    %928 = vmatpush1.msra.mxu0 0.0
    %929 = vmatprep.subr.mxu0 0.0
    %930 = vmatpush1.msra.mxu0 0.0
    %931 = vmatprep.subr.mxu0 0.0
    %932 = vmatpush1.msra.mxu0 0.0
    %933 = vmatprep.mubr.f32.mxu0 0.0
    %934 = vmatmul.mubr.f32.gmra.mrb[0].mxu0 %v867
    %v935 = vpop.f32.mrb[0].mxu0
    %v936 = vadd.f32 0.0, %v935
    %v937 = vpop.f32.mrb[0].mxu0
    %v938 = vadd.f32 0.0, %v937
    %939 = vdwg.mxu0
    %v940 = vadd.f32 %v864, %v936
    %v941 = vadd.f32 %v865, %v938
    %v942 = vmul.f32 %v940, %v94
    %v943 = vmul.f32 %v941, %v95
    %v944 = vtanh.pop %v942
    %v945 = vtanh.pop %v943
    %v946 = vmul.f32 %v944, %v94
    %v947 = vmul.f32 %v945, %v95
    %v948 = vadd.f32 %v946, %v96
    %v949 = vadd.f32 %v947, %v97
    %951 = vrot.lane.b32.xlu0 %v862, 64
    %v952 = vpop.permute.xlu0 %951
    %v954 = vmul.f32 %v948, %v952
    %v955 = vmul.f32 %v948, %v949
    %957 = vrot.lane.b32.xlu0 %v955, 64
    %v958 = vpop.permute.xlu0 %957
    %v960 = vadd.f32 %v954, %v958
    %v961 = vtanh.pop %v960
    %v962 = vmul.f32 %v949, %v961
    %v963 = vsub.s32 5, %v99
    %vm964 = vcmp.ge.s32.totalorder %v963, 0
    %vm965 = vcmp.lt.s32.totalorder %v963, %v384
    %v966 = vsel %vm964, 1, 0
    %vm967 = vcmp.eq.s32.totalorder %v966, 1
    %vm968 = vmand %vm967, %vm965
    %970 = vrot.lane.b32.xlu0 %v962, 64
    %v971 = vpop.permute.xlu0 %970
    %v973 = vsel %vm968, %v971, %v857
    %975 = vrot.lane.b32.xlu0 %v960, 64
    %v976 = vpop.permute.xlu0 %975
    %v978 = vsel %vm968, %v976, %v862
    %s979 = scalar_lea.vmem [#allocation2], 96
    %v980 = vld [vmem:[%s979] sm:$0xff]
    %v981 = vld [vmem:[%s979 + $0x8] sm:$0xff]
    %v983 = vsel %vm282, %v973, 0
    %985 = vmatprep.subr.mxu0 %v69
    %986 = vmatpush1.msra.mxu0 %v68
    %987 = vmatprep.subr.mxu0 %v71
    %988 = vmatpush1.msra.mxu0 %v70
    %989 = vmatprep.subr.mxu0 %v73
    %990 = vmatpush1.msra.mxu0 %v72
    %991 = vmatprep.subr.mxu0 %v75
    %992 = vmatpush1.msra.mxu0 %v74
    %993 = vmatprep.subr.mxu0 %v77
    %994 = vmatpush1.msra.mxu0 %v76
    %995 = vmatprep.subr.mxu0 %v79
    %996 = vmatpush1.msra.mxu0 %v78
    %997 = vmatprep.subr.mxu0 %v81
    %998 = vmatpush1.msra.mxu0 %v80
    %999 = vmatprep.subr.mxu0 %v83
    %1000 = vmatpush1.msra.mxu0 %v82
    %1001 = vmatprep.subr.mxu0 0.0
    %1002 = vmatpush1.msra.mxu0 0.0
    %1003 = vmatprep.subr.mxu0 0.0
    %1004 = vmatpush1.msra.mxu0 0.0
    %1005 = vmatprep.subr.mxu0 0.0
    %1006 = vmatpush1.msra.mxu0 0.0
    %1007 = vmatprep.subr.mxu0 0.0
    %1008 = vmatpush1.msra.mxu0 0.0
    %1009 = vmatprep.subr.mxu0 0.0
    %1010 = vmatpush1.msra.mxu0 0.0
    %1011 = vmatprep.subr.mxu0 0.0
    %1012 = vmatpush1.msra.mxu0 0.0
    %1013 = vmatprep.subr.mxu0 0.0
    %1014 = vmatpush1.msra.mxu0 0.0
    %1015 = vmatprep.subr.mxu0 0.0
    %1016 = vmatpush1.msra.mxu0 0.0
    %1017 = vmatprep.subr.mxu0 0.0
    %1018 = vmatpush1.msra.mxu0 0.0
    %1019 = vmatprep.subr.mxu0 0.0
    %1020 = vmatpush1.msra.mxu0 0.0
    %1021 = vmatprep.subr.mxu0 0.0
    %1022 = vmatpush1.msra.mxu0 0.0
    %1023 = vmatprep.subr.mxu0 0.0
    %1024 = vmatpush1.msra.mxu0 0.0
    %1025 = vmatprep.subr.mxu0 0.0
    %1026 = vmatpush1.msra.mxu0 0.0
    %1027 = vmatprep.subr.mxu0 0.0
    %1028 = vmatpush1.msra.mxu0 0.0
    %1029 = vmatprep.subr.mxu0 0.0
    %1030 = vmatpush1.msra.mxu0 0.0
    %1031 = vmatprep.subr.mxu0 0.0
    %1032 = vmatpush1.msra.mxu0 0.0
    %1033 = vmatprep.subr.mxu0 0.0
    %1034 = vmatpush1.msra.mxu0 0.0
    %1035 = vmatprep.subr.mxu0 0.0
    %1036 = vmatpush1.msra.mxu0 0.0
    %1037 = vmatprep.subr.mxu0 0.0
    %1038 = vmatpush1.msra.mxu0 0.0
    %1039 = vmatprep.subr.mxu0 0.0
    %1040 = vmatpush1.msra.mxu0 0.0
    %1041 = vmatprep.subr.mxu0 0.0
    %1042 = vmatpush1.msra.mxu0 0.0
    %1043 = vmatprep.subr.mxu0 0.0
    %1044 = vmatpush1.msra.mxu0 0.0
    %1045 = vmatprep.subr.mxu0 0.0
    %1046 = vmatpush1.msra.mxu0 0.0
    %1047 = vmatprep.subr.mxu0 0.0
    %1048 = vmatpush1.msra.mxu0 0.0
    %1049 = vmatprep.mubr.f32.mxu0 0.0
    %1050 = vmatmul.mubr.f32.gmra.mrb[0].mxu0 %v983
    %v1051 = vpop.f32.mrb[0].mxu0
    %v1052 = vadd.f32 0.0, %v1051
    %v1053 = vpop.f32.mrb[0].mxu0
    %v1054 = vadd.f32 0.0, %v1053
    %1055 = vdwg.mxu0
    %v1056 = vadd.f32 %v980, %v1052
    %v1057 = vadd.f32 %v981, %v1054
    %v1058 = vmul.f32 %v1056, %v94
    %v1059 = vmul.f32 %v1057, %v95
    %v1060 = vtanh.pop %v1058
    %v1061 = vtanh.pop %v1059
    %v1062 = vmul.f32 %v1060, %v94
    %v1063 = vmul.f32 %v1061, %v95
    %v1064 = vadd.f32 %v1062, %v96
    %v1065 = vadd.f32 %v1063, %v97
    %1067 = vrot.lane.b32.xlu0 %v978, 64
    %v1068 = vpop.permute.xlu0 %1067
    %v1070 = vmul.f32 %v1064, %v1068
    %v1071 = vmul.f32 %v1064, %v1065
    %1073 = vrot.lane.b32.xlu0 %v1071, 64
    %v1074 = vpop.permute.xlu0 %1073
    %v1076 = vadd.f32 %v1070, %v1074
    %v1077 = vtanh.pop %v1076
    %v1078 = vmul.f32 %v1065, %v1077
    %v1079 = vsub.s32 6, %v99
    %vm1080 = vcmp.ge.s32.totalorder %v1079, 0
    %vm1081 = vcmp.lt.s32.totalorder %v1079, %v384
    %v1082 = vsel %vm1080, 1, 0
    %vm1083 = vcmp.eq.s32.totalorder %v1082, 1
    %vm1084 = vmand %vm1083, %vm1081
    %1086 = vrot.lane.b32.xlu0 %v1078, 64
    %v1087 = vpop.permute.xlu0 %1086
    %v1089 = vsel %vm1084, %v1087, %v973
    %1091 = vrot.lane.b32.xlu0 %v1076, 64
    %v1092 = vpop.permute.xlu0 %1091
    %v1094 = vsel %vm1084, %v1092, %v978
    %s1095 = scalar_lea.vmem [#allocation2], 112
    %v1096 = vld [vmem:[%s1095] sm:$0xff]
    %v1097 = vld [vmem:[%s1095 + $0x8] sm:$0xff]
    %v1099 = vsel %vm282, %v1089, 0
    %1101 = vmatprep.subr.mxu0 %v69
    %1102 = vmatpush1.msra.mxu0 %v68
    %1103 = vmatprep.subr.mxu0 %v71
    %1104 = vmatpush1.msra.mxu0 %v70
    %1105 = vmatprep.subr.mxu0 %v73
    %1106 = vmatpush1.msra.mxu0 %v72
    %1107 = vmatprep.subr.mxu0 %v75
    %1108 = vmatpush1.msra.mxu0 %v74
    %1109 = vmatprep.subr.mxu0 %v77
    %1110 = vmatpush1.msra.mxu0 %v76
    %1111 = vmatprep.subr.mxu0 %v79
    %1112 = vmatpush1.msra.mxu0 %v78
    %1113 = vmatprep.subr.mxu0 %v81
    %1114 = vmatpush1.msra.mxu0 %v80
    %1115 = vmatprep.subr.mxu0 %v83
    %1116 = vmatpush1.msra.mxu0 %v82
    %1117 = vmatprep.subr.mxu0 0.0
    %1118 = vmatpush1.msra.mxu0 0.0
    %1119 = vmatprep.subr.mxu0 0.0
    %1120 = vmatpush1.msra.mxu0 0.0
    %1121 = vmatprep.subr.mxu0 0.0
    %1122 = vmatpush1.msra.mxu0 0.0
    %1123 = vmatprep.subr.mxu0 0.0
    %1124 = vmatpush1.msra.mxu0 0.0
    %1125 = vmatprep.subr.mxu0 0.0
    %1126 = vmatpush1.msra.mxu0 0.0
    %1127 = vmatprep.subr.mxu0 0.0
    %1128 = vmatpush1.msra.mxu0 0.0
    %1129 = vmatprep.subr.mxu0 0.0
    %1130 = vmatpush1.msra.mxu0 0.0
    %1131 = vmatprep.subr.mxu0 0.0
    %1132 = vmatpush1.msra.mxu0 0.0
    %1133 = vmatprep.subr.mxu0 0.0
    %1134 = vmatpush1.msra.mxu0 0.0
    %1135 = vmatprep.subr.mxu0 0.0
    %1136 = vmatpush1.msra.mxu0 0.0
    %1137 = vmatprep.subr.mxu0 0.0
    %1138 = vmatpush1.msra.mxu0 0.0
    %1139 = vmatprep.subr.mxu0 0.0
    %1140 = vmatpush1.msra.mxu0 0.0
    %1141 = vmatprep.subr.mxu0 0.0
    %1142 = vmatpush1.msra.mxu0 0.0
    %1143 = vmatprep.subr.mxu0 0.0
    %1144 = vmatpush1.msra.mxu0 0.0
    %1145 = vmatprep.subr.mxu0 0.0
    %1146 = vmatpush1.msra.mxu0 0.0
    %1147 = vmatprep.subr.mxu0 0.0
    %1148 = vmatpush1.msra.mxu0 0.0
    %1149 = vmatprep.subr.mxu0 0.0
    %1150 = vmatpush1.msra.mxu0 0.0
    %1151 = vmatprep.subr.mxu0 0.0
    %1152 = vmatpush1.msra.mxu0 0.0
    %1153 = vmatprep.subr.mxu0 0.0
    %1154 = vmatpush1.msra.mxu0 0.0
    %1155 = vmatprep.subr.mxu0 0.0
    %1156 = vmatpush1.msra.mxu0 0.0
    %1157 = vmatprep.subr.mxu0 0.0
    %1158 = vmatpush1.msra.mxu0 0.0
    %1159 = vmatprep.subr.mxu0 0.0
    %1160 = vmatpush1.msra.mxu0 0.0
    %1161 = vmatprep.subr.mxu0 0.0
    %1162 = vmatpush1.msra.mxu0 0.0
    %1163 = vmatprep.subr.mxu0 0.0
    %1164 = vmatpush1.msra.mxu0 0.0
    %1165 = vmatprep.mubr.f32.mxu0 0.0
    %1166 = vmatmul.mubr.f32.gmra.mrb[0].mxu0 %v1099
    %v1167 = vpop.f32.mrb[0].mxu0
    %v1168 = vadd.f32 0.0, %v1167
    %v1169 = vpop.f32.mrb[0].mxu0
    %v1170 = vadd.f32 0.0, %v1169
    %1171 = vdwg.mxu0
    %v1172 = vadd.f32 %v1096, %v1168
    %v1173 = vadd.f32 %v1097, %v1170
    %v1174 = vmul.f32 %v1172, %v94
    %v1175 = vmul.f32 %v1173, %v95
    %v1176 = vtanh.pop %v1174
    %v1177 = vtanh.pop %v1175
    %v1178 = vmul.f32 %v1176, %v94
    %v1179 = vmul.f32 %v1177, %v95
    %v1180 = vadd.f32 %v1178, %v96
    %v1181 = vadd.f32 %v1179, %v97
    %1183 = vrot.lane.b32.xlu0 %v1094, 64
    %v1184 = vpop.permute.xlu0 %1183
    %v1186 = vmul.f32 %v1180, %v1184
    %v1187 = vmul.f32 %v1180, %v1181
    %1189 = vrot.lane.b32.xlu0 %v1187, 64
    %v1190 = vpop.permute.xlu0 %1189
    %v1192 = vadd.f32 %v1186, %v1190
    %v1193 = vtanh.pop %v1192
    %v1194 = vmul.f32 %v1181, %v1193
    %v1195 = vsub.s32 7, %v99
    %vm1196 = vcmp.ge.s32.totalorder %v1195, 0
    %vm1197 = vcmp.lt.s32.totalorder %v1195, %v384
    %v1198 = vsel %vm1196, 1, 0
    %vm1199 = vcmp.eq.s32.totalorder %v1198, 1
    %vm1200 = vmand %vm1199, %vm1197
    %1202 = vrot.lane.b32.xlu0 %v1194, 64
    %v1203 = vpop.permute.xlu0 %1202
    %v1205 = vsel %vm1200, %v1203, %v1089
    %1207 = vrot.lane.b32.xlu0 %v1192, 64
    %v1208 = vpop.permute.xlu0 %1207
    %v1210 = vsel %vm1200, %v1208, %v1094
    %v1212 = vsel %vm282, %v1205, 0
    %1214 = vmatprep.subr.mxu0 %v69
    %1215 = vmatpush1.msra.mxu0 %v68
    %1216 = vmatprep.subr.mxu0 %v71
    %1217 = vmatpush1.msra.mxu0 %v70
    %1218 = vmatprep.subr.mxu0 %v73
    %1219 = vmatpush1.msra.mxu0 %v72
    %1220 = vmatprep.subr.mxu0 %v75
    %1221 = vmatpush1.msra.mxu0 %v74
    %1222 = vmatprep.subr.mxu0 %v77
    %1223 = vmatpush1.msra.mxu0 %v76
    %1224 = vmatprep.subr.mxu0 %v79
    %1225 = vmatpush1.msra.mxu0 %v78
    %1226 = vmatprep.subr.mxu0 %v81
    %1227 = vmatpush1.msra.mxu0 %v80
    %1228 = vmatprep.subr.mxu0 %v83
    %1229 = vmatpush1.msra.mxu0 %v82
    %1230 = vmatprep.subr.mxu0 0.0
    %1231 = vmatpush1.msra.mxu0 0.0
    %1232 = vmatprep.subr.mxu0 0.0
    %1233 = vmatpush1.msra.mxu0 0.0
    %1234 = vmatprep.subr.mxu0 0.0
    %1235 = vmatpush1.msra.mxu0 0.0
    %1236 = vmatprep.subr.mxu0 0.0
    %1237 = vmatpush1.msra.mxu0 0.0
    %1238 = vmatprep.subr.mxu0 0.0
    %1239 = vmatpush1.msra.mxu0 0.0
    %1240 = vmatprep.subr.mxu0 0.0
    %1241 = vmatpush1.msra.mxu0 0.0
    %1242 = vmatprep.subr.mxu0 0.0
    %1243 = vmatpush1.msra.mxu0 0.0
    %1244 = vmatprep.subr.mxu0 0.0
    %1245 = vmatpush1.msra.mxu0 0.0
    %1246 = vmatprep.subr.mxu0 0.0
    %1247 = vmatpush1.msra.mxu0 0.0
    %1248 = vmatprep.subr.mxu0 0.0
    %1249 = vmatpush1.msra.mxu0 0.0
    %1250 = vmatprep.subr.mxu0 0.0
    %1251 = vmatpush1.msra.mxu0 0.0
    %1252 = vmatprep.subr.mxu0 0.0
    %1253 = vmatpush1.msra.mxu0 0.0
    %1254 = vmatprep.subr.mxu0 0.0
    %1255 = vmatpush1.msra.mxu0 0.0
    %1256 = vmatprep.subr.mxu0 0.0
    %1257 = vmatpush1.msra.mxu0 0.0
    %1258 = vmatprep.subr.mxu0 0.0
    %1259 = vmatpush1.msra.mxu0 0.0
    %1260 = vmatprep.subr.mxu0 0.0
    %1261 = vmatpush1.msra.mxu0 0.0
    %1262 = vmatprep.subr.mxu0 0.0
    %1263 = vmatpush1.msra.mxu0 0.0
    %1264 = vmatprep.subr.mxu0 0.0
    %1265 = vmatpush1.msra.mxu0 0.0
    %1266 = vmatprep.subr.mxu0 0.0
    %1267 = vmatpush1.msra.mxu0 0.0
    %1268 = vmatprep.subr.mxu0 0.0
    %1269 = vmatpush1.msra.mxu0 0.0
    %1270 = vmatprep.subr.mxu0 0.0
    %1271 = vmatpush1.msra.mxu0 0.0
    %1272 = vmatprep.subr.mxu0 0.0
    %1273 = vmatpush1.msra.mxu0 0.0
    %1274 = vmatprep.subr.mxu0 0.0
    %1275 = vmatpush1.msra.mxu0 0.0
    %1276 = vmatprep.subr.mxu0 0.0
    %1277 = vmatpush1.msra.mxu0 0.0
    %1278 = vmatprep.mubr.f32.mxu0 0.0
    %1279 = vmatmul.mubr.f32.gmra.mrb[0].mxu0 %v1212
    %v1280 = vpop.f32.mrb[0].mxu0
    %v1281 = vadd.f32 0.0, %v1280
    %v1282 = vpop.f32.mrb[0].mxu0
    %v1283 = vadd.f32 0.0, %v1282
    %1284 = vdwg.mxu0
    %v1285 = vadd.f32 %v1096, %v1281
    %v1286 = vadd.f32 %v1097, %v1283
    %v1287 = vmul.f32 %v1285, %v94
    %v1288 = vmul.f32 %v1286, %v95
    %v1289 = vtanh.pop %v1287
    %v1290 = vtanh.pop %v1288
    %v1291 = vmul.f32 %v1289, %v94
    %v1292 = vmul.f32 %v1290, %v95
    %v1293 = vadd.f32 %v1291, %v96
    %v1294 = vadd.f32 %v1292, %v97
    %1296 = vrot.lane.b32.xlu0 %v1210, 64
    %v1297 = vpop.permute.xlu0 %1296
    %v1299 = vmul.f32 %v1293, %v1297
    %v1300 = vmul.f32 %v1293, %v1294
    %1302 = vrot.lane.b32.xlu0 %v1300, 64
    %v1303 = vpop.permute.xlu0 %1302
    %v1305 = vadd.f32 %v1299, %v1303
    %v1306 = vtanh.pop %v1305
    %v1307 = vmul.f32 %v1294, %v1306
    %v1308 = vsub.s32 8, %v99
    %vm1309 = vcmp.ge.s32.totalorder %v1308, 0
    %vm1310 = vcmp.lt.s32.totalorder %v1308, %v384
    %v1311 = vsel %vm1309, 1, 0
    %vm1312 = vcmp.eq.s32.totalorder %v1311, 1
    %vm1313 = vmand %vm1312, %vm1310
    %1315 = vrot.lane.b32.xlu0 %v1307, 64
    %v1316 = vpop.permute.xlu0 %1315
    %v1318 = vsel %vm1313, %v1316, %v1205
    %1319 = vst.msk [vmem:[#allocation9] sm:$0xff] %vm282, %v1318
    // Predicated region
    $region42: #{tpu_custom_call.1} parent=1 // pred_check
      _
    $region43: #{tpu_custom_call.1} parent=1 // pred_check_branch
      %1321 = sbr.rel (0) target = $region45
    $region44: #{tpu_custom_call.1} parent=1 // pred_region
      %s1323 = ssub.s32 128, 128
      %1324 = vsyncadd [#allocation5], %s1323
      %s1326 = sshll.u32 [#allocation9], 4
      %s1327 = int_to_ptr.vmem [resolvable:$true] %s1326
      %1329 = dma.vmem_to_hbm [thread:$0]  %s1327, 128, %s7, [#allocation5]
    $region45: #{tpu_custom_call.1} parent=1 // pred_fallthru
      _
    // Predicated region
    $region46: #{tpu_custom_call.1} parent=1 // pred_check
      _
    $region47: #{tpu_custom_call.1} parent=1 // pred_check_branch
      %1331 = sbr.rel (0) target = $region49
    $region48: #{tpu_custom_call.1} parent=1 // pred_region
      %1332 = dma.done [#allocation5], 128
    $region49: #{tpu_custom_call.1} parent=1 // pred_fallthru
      _
    %1333 = vsyncpa [#allocation4], 1
    %1334 = vsyncpa [#allocation7], 1
    %1335 = vsyncpa [#allocation5], 1

</llo_original>
